<compile_context>
chip_gen: v7x
topology: tpu7x:2x2x1
jax: 0.10.0
libtpu: 0.0.40
codegen_flags: <defaults>
</compile_context>

<pallas_src>
import functools

import jax
import jax.numpy as jnp
from jax.experimental import pallas as pl
from jax.experimental.pallas import tpu as pltpu


def _fused_mha_kernel(xk_ref, xq_ref, xv_ref, msk_ref,
                      wk_ref, wq_ref, wv_ref, wp_ref, bp_ref,
                      o_ref, ctx_ref, *, num_heads, head_size, b_blk, seq_len):
    L = seq_len
    cdt = wk_ref.dtype                       # MXU compute dtype (bf16)

    # Fold the batch block into the M dimension of the QKV projections.
    xk = xk_ref[...].reshape(b_blk * L, -1).astype(cdt)
    xq = xq_ref[...].reshape(b_blk * L, -1).astype(cdt)
    xv = xv_ref[...].reshape(b_blk * L, -1).astype(cdt)

    # Lane-dense stacked projections: one MXU pass each with N = H*hs.
    # (The 1/sqrt(hs) attention scale is already folded into wq.)
    k = jnp.dot(xk, wk_ref[...], preferred_element_type=jnp.float32).astype(cdt)
    q = jnp.dot(xq, wq_ref[...], preferred_element_type=jnp.float32).astype(cdt)
    v = jnp.dot(xv, wv_ref[...], preferred_element_type=jnp.float32).astype(cdt)

    Hhs = num_heads * head_size
    k3 = k.reshape(b_blk, L, Hhs)
    q3 = q.reshape(b_blk, L, Hhs)
    v3 = v.reshape(b_blk, L, Hhs)

    neg_mask = msk_ref[...]                  # (L, L) additive mask, f32

    # Per-head attention (H is small -> static unrolled loop).  Each head's
    # context goes into its lane slice of the ctx scratch so the output
    # projection below is a single K = H*hs matmul.
    for h in range(num_heads):
        lo = h * head_size
        qh = q3[:, :, lo:lo + head_size]     # (b_blk, L, hs)
        kh = k3[:, :, lo:lo + head_size]
        vh = v3[:, :, lo:lo + head_size]

        # Q @ K^T (batched over the batch block) without materializing K^T.
        s = jnp.einsum('bqd,bkd->bqk', qh, kh,
                       preferred_element_type=jnp.float32)        # (b_blk, L, L)
        s = s + neg_mask[None, :, :]

        # softmax over the last axis, f32 throughout
        m = jnp.max(s, axis=-1, keepdims=True)
        e = jnp.exp(s - m)
        denom = jnp.sum(e, axis=-1, keepdims=True)
        att = (e * pl.reciprocal(denom, approx=True)).astype(cdt)
        # TODO(synk): attention dropout omitted (eval-mode identity).

        ctx_h = jnp.einsum('bqk,bkd->bqd', att, vh,
                           preferred_element_type=jnp.float32)    # (b_blk, L, hs)
        ctx_ref[:, lo:lo + head_size] = (
            ctx_h.reshape(b_blk * L, head_size).astype(cdt))

    # Single fused output projection: (b_blk*L, H*hs) @ (H*hs, d_att) + bias.
    out = jnp.dot(ctx_ref[...], wp_ref[...],
                  preferred_element_type=jnp.float32) + bp_ref[...]
    # TODO(synk): final dropout omitted (eval-mode identity).
    o_ref[...] = out.reshape(b_blk, L, -1).astype(o_ref.dtype)


def _pick_batch_block(batch):
    """Largest batch block that still leaves >= 2 grid steps (v7x: 2 TCs)."""
    if batch <= 1:
        return 1
    for cand in range(batch // 2, 0, -1):
        if batch % cand == 0:
            return cand
    return 1


def _vmem_limit_bytes(block_bytes):
    cap = 128 * 1024 * 1024
    try:
        info = pltpu.get_tpu_info()
        cap = int(getattr(info, "vmem_capacity_bytes", cap)) or cap
    except Exception:
        pass
    want = 4 * block_bytes + (2 << 20)        # double buffering + headroom
    # Never request more than ~75% of physical VMEM (v7x physical = 64 MiB).
    return int(max(16 << 20, min(want, (cap * 3) // 4)))


def multiheads_forward(idx_k, idx_q, idx_v, src_msk, params,
                       compute_dtype=jnp.bfloat16):
    """params: Wk/Wq/Wv (H, d_model, hs), Wp (H*hs, d_att), bp (d_att,)."""
    Wk, Wq, Wv = params["Wk"], params["Wq"], params["Wv"]
    Wp, bp = params["Wp"], params["bp"]
    B, L, d_model = idx_k.shape
    H, _, hs = Wk.shape
    d_att = Wp.shape[1]
    Hhs = H * hs

    b_blk = _pick_batch_block(B)
    grid = (B // b_blk,)

    # Stack per-head weights lane-dense: (H, d_model, hs) -> (d_model, H*hs);
    # head h occupies columns [h*hs, (h+1)*hs) (matches torch.cat head order).
    wk_s = jnp.transpose(Wk, (1, 0, 2)).reshape(d_model, Hhs).astype(compute_dtype)
    # Fold the 1/sqrt(hs) attention scale into the Q weights (free at trace time).
    wq_s = (jnp.transpose(Wq, (1, 0, 2)).reshape(d_model, Hhs)
            * (float(hs) ** -0.5)).astype(compute_dtype)
    wv_s = jnp.transpose(Wv, (1, 0, 2)).reshape(d_model, Hhs).astype(compute_dtype)
    wp_c = Wp.astype(compute_dtype)
    bias2d = bp.reshape(1, d_att).astype(jnp.float32)

    # Precomputed additive mask (0 -> -1e9, else 0), shared across the batch.
    neg_mask = jnp.where(src_msk.reshape(L, L) == 0,
                         -1000000000.0, 0.0).astype(jnp.float32)

    # bf16 activations: halves activation DMA and feeds the MXU natively.
    xk = idx_k.astype(compute_dtype)
    xq = idx_q.astype(compute_dtype)
    xv = idx_v.astype(compute_dtype)

    act = jnp.dtype(compute_dtype).itemsize

    # Advisory cost estimate for the XLA scheduler.
    flops = int(B * (3 * 2 * L * d_model * Hhs          # QKV projections
                     + H * (2 * L * L * hs)             # Q @ K^T
                     + H * (2 * L * L * hs)             # att @ V
                     + 2 * L * Hhs * d_att))            # output projection
    transcendentals = int(B * H * L * L)                 # exp
    bytes_accessed = int(act * (3 * B * L * d_model + 3 * d_model * Hhs
                                + Hhs * d_att)
                         + 4 * (L * L + d_att + B * L * d_att))

    # Per-grid-step VMEM footprint estimate.
    block_bytes = (3 * b_blk * L * d_model * act                 # activation blocks
                   + 3 * d_model * Hhs * act + Hhs * d_att * act  # weights
                   + L * L * 4 + d_att * 4                        # mask + bias
                   + b_blk * L * d_att * 4                        # output block
                   + b_blk * L * Hhs * act                        # ctx scratch
                   + b_blk * L * (3 * Hhs + 2 * L) * 4)           # f32 temporaries
    vmem_limit = _vmem_limit_bytes(block_bytes)

    kernel = functools.partial(_fused_mha_kernel, num_heads=H, head_size=hs,
                               b_blk=b_blk, seq_len=L)

    out = pl.pallas_call(
        kernel,
        out_shape=jax.ShapeDtypeStruct((B, L, d_att), jnp.float32),
        grid_spec=pltpu.PrefetchScalarGridSpec(
            num_scalar_prefetch=0,
            grid=grid,
            in_specs=[
                pl.BlockSpec((b_blk, L, d_model), lambda b: (b, 0, 0)),   # idx_k
                pl.BlockSpec((b_blk, L, d_model), lambda b: (b, 0, 0)),   # idx_q
                pl.BlockSpec((b_blk, L, d_model), lambda b: (b, 0, 0)),   # idx_v
                pl.BlockSpec((L, L),              lambda b: (0, 0)),      # additive mask
                pl.BlockSpec((d_model, Hhs),      lambda b: (0, 0)),      # Wk stacked
                pl.BlockSpec((d_model, Hhs),      lambda b: (0, 0)),      # Wq stacked*scale
                pl.BlockSpec((d_model, Hhs),      lambda b: (0, 0)),      # Wv stacked
                pl.BlockSpec((Hhs, d_att),        lambda b: (0, 0)),      # Wp
                pl.BlockSpec((1, d_att),          lambda b: (0, 0)),      # bias
            ],
            out_specs=pl.BlockSpec((b_blk, L, d_att), lambda b: (b, 0, 0)),
            scratch_shapes=[pltpu.VMEM((b_blk * L, Hhs), compute_dtype)],
        ),
        compiler_params=pltpu.CompilerParams(
            dimension_semantics=("parallel",),
            vmem_limit_bytes=vmem_limit),
        cost_estimate=pl.CostEstimate(flops=flops,
                                      transcendentals=transcendentals,
                                      bytes_accessed=bytes_accessed),
    )(xk, xq, xv, neg_mask, wk_s, wq_s, wv_s, wp_c, bias2d)
    return out


def init_params(key, number_of_heads, d_model, d_att_weigh):
    assert d_att_weigh % number_of_heads == 0
    hs = d_att_weigh // number_of_heads
    k1, k2, k3, k4, k5 = jax.random.split(key, 5)
    scale_in = 1.0 / jnp.sqrt(d_model)
    scale_p = 1.0 / jnp.sqrt(hs * number_of_heads)
    return {
        "Wk": jax.random.uniform(k1, (number_of_heads, d_model, hs),
                                 jnp.float32, -scale_in, scale_in),
        "Wq": jax.random.uniform(k2, (number_of_heads, d_model, hs),
                                 jnp.float32, -scale_in, scale_in),
        "Wv": jax.random.uniform(k3, (number_of_heads, d_model, hs),
                                 jnp.float32, -scale_in, scale_in),
        "Wp": jax.random.uniform(k4, (hs * number_of_heads, d_att_weigh),
                                 jnp.float32, -scale_p, scale_p),
        "bp": jax.random.uniform(k5, (d_att_weigh,),
                                 jnp.float32, -scale_p, scale_p),
    }


def _reference(idx_k, idx_q, idx_v, src_msk, params):
    Wk, Wq, Wv, Wp, bp = (params["Wk"], params["Wq"], params["Wv"],
                          params["Wp"], params["bp"])
    B, L, _ = idx_k.shape
    H, _, hs = Wk.shape
    K = jnp.einsum("bld,hdk->bhlk", idx_k, Wk)
    Q = jnp.einsum("bld,hdk->bhlk", idx_q, Wq)
    V = jnp.einsum("bld,hdk->bhlk", idx_v, Wv)
    S = jnp.einsum("bhqk,bhlk->bhql", Q, K) * (hs ** -0.5)
    msk = jnp.broadcast_to(src_msk, (B, L, L))[:, None, :, :]
    S = jnp.where(msk == 0, -1000000000.0, S)
    att = jax.nn.softmax(S, axis=-1)
    out = jnp.einsum("bhql,bhlk->bhqk", att, V)
    out = jnp.transpose(out, (0, 2, 1, 3)).reshape(B, L, H * hs)
    return out @ Wp + bp


if __name__ == "__main__":
    # Multiheads(number_of_heads=4, d_model=32, d_att_weigh=32, seq_len=8, dropout=0.0)
    B, L, d_model = 2, 8, 32
    number_of_heads, d_att_weigh = 4, 32

    key = jax.random.PRNGKey(0)
    kp, kk, kq, kv = jax.random.split(key, 4)
    params = init_params(kp, number_of_heads, d_model, d_att_weigh)

    idx_k = jax.random.normal(kk, (B, L, d_model), jnp.float32)
    idx_q = jax.random.normal(kq, (B, L, d_model), jnp.float32)
    idx_v = jax.random.normal(kv, (B, L, d_model), jnp.float32)
    src_msk = jnp.tril(jnp.ones((L, L), jnp.float32))  # causal mask (0 => masked)

    out = multiheads_forward(idx_k, idx_q, idx_v, src_msk, params)
    out = jax.block_until_ready(out)

    ref = _reference(idx_k, idx_q, idx_v, src_msk, params)
    assert out.shape == (B, L, d_att_weigh)
    # bf16 MXU operands (softmax kept in f32) -> loosened tolerance vs. the
    # pure-f32 reference.
    assert jnp.allclose(out, ref, atol=5e-2, rtol=5e-2)
    print("KERNEL_OK")
</pallas_src>

<mosaic_0001>
module attributes {stable_mosaic.version = 11 : i64} {
  func.func @_fused_mha_kernel(%arg0: i32, %arg1: memref<1x8x32xbf16, #tpu.memory_space<vmem>>, %arg2: memref<1x8x32xbf16, #tpu.memory_space<vmem>>, %arg3: memref<1x8x32xbf16, #tpu.memory_space<vmem>>, %arg4: memref<8x8xf32, #tpu.memory_space<vmem>>, %arg5: memref<32x32xbf16, #tpu.memory_space<vmem>>, %arg6: memref<32x32xbf16, #tpu.memory_space<vmem>>, %arg7: memref<32x32xbf16, #tpu.memory_space<vmem>>, %arg8: memref<32x32xbf16, #tpu.memory_space<vmem>>, %arg9: memref<1x32xf32, #tpu.memory_space<vmem>>, %arg10: memref<1x8x32xf32, #tpu.memory_space<vmem>>, %arg11: memref<8x32xbf16, #tpu.memory_space<vmem>>) attributes {dimension_semantics = [#tpu.dimension_semantics<parallel>], iteration_bounds = array<i64: 2>, scalar_prefetch = 0 : i64, scratch_operands = 1 : i64, tpu.core_type = #tpu.core_type<tc>, window_params = [{transform_indices = @transform_0, window_bounds = array<i64: 1, 8, 32>}, {transform_indices = @transform_1, window_bounds = array<i64: 1, 8, 32>}, {transform_indices = @transform_2, window_bounds = array<i64: 1, 8, 32>}, {pipeline_mode = #tpu.pipeline_mode<synchronous>, transform_indices = @transform_3, window_bounds = array<i64: 8, 8>}, {pipeline_mode = #tpu.pipeline_mode<synchronous>, transform_indices = @transform_4, window_bounds = array<i64: 32, 32>}, {pipeline_mode = #tpu.pipeline_mode<synchronous>, transform_indices = @transform_5, window_bounds = array<i64: 32, 32>}, {pipeline_mode = #tpu.pipeline_mode<synchronous>, transform_indices = @transform_6, window_bounds = array<i64: 32, 32>}, {pipeline_mode = #tpu.pipeline_mode<synchronous>, transform_indices = @transform_7, window_bounds = array<i64: 32, 32>}, {pipeline_mode = #tpu.pipeline_mode<synchronous>, transform_indices = @transform_8, window_bounds = array<i64: 1, 32>}, {transform_indices = @transform_9, window_bounds = array<i64: 1, 8, 32>}]} {
    %c0 = arith.constant 0 : index
    %c0_0 = arith.constant 0 : index
    %c0_1 = arith.constant 0 : index
    %0 = vector.load %arg1[%c0, %c0_0, %c0_1] : memref<1x8x32xbf16, #tpu.memory_space<vmem>>, vector<1x8x32xbf16>
    %1 = vector.shape_cast %0 : vector<1x8x32xbf16> to vector<8x32xbf16>
    %c0_2 = arith.constant 0 : index
    %c0_3 = arith.constant 0 : index
    %c0_4 = arith.constant 0 : index
    %2 = vector.load %arg2[%c0_2, %c0_3, %c0_4] : memref<1x8x32xbf16, #tpu.memory_space<vmem>>, vector<1x8x32xbf16>
    %3 = vector.shape_cast %2 : vector<1x8x32xbf16> to vector<8x32xbf16>
    %c0_5 = arith.constant 0 : index
    %c0_6 = arith.constant 0 : index
    %c0_7 = arith.constant 0 : index
    %4 = vector.load %arg3[%c0_5, %c0_6, %c0_7] : memref<1x8x32xbf16, #tpu.memory_space<vmem>>, vector<1x8x32xbf16>
    %5 = vector.shape_cast %4 : vector<1x8x32xbf16> to vector<8x32xbf16>
    %c0_8 = arith.constant 0 : index
    %c0_9 = arith.constant 0 : index
    %6 = vector.load %arg5[%c0_8, %c0_9] : memref<32x32xbf16, #tpu.memory_space<vmem>>, vector<32x32xbf16>
    %cst = arith.constant dense<0.000000e+00> : vector<8x32xf32>
    %7 = tpu.matmul %1, %6, %cst {dimension_numbers = #tpu.dot_dimension_numbers<[1], [0], [0], [1], [0, 0, 1, 1], [], []>} : vector<8x32xbf16>, vector<32x32xbf16>, vector<8x32xf32> -> vector<8x32xf32>
    %8 = arith.truncf %7 : vector<8x32xf32> to vector<8x32xbf16>
    %c0_10 = arith.constant 0 : index
    %c0_11 = arith.constant 0 : index
    %9 = vector.load %arg6[%c0_10, %c0_11] : memref<32x32xbf16, #tpu.memory_space<vmem>>, vector<32x32xbf16>
    %cst_12 = arith.constant dense<0.000000e+00> : vector<8x32xf32>
    %10 = tpu.matmul %3, %9, %cst_12 {dimension_numbers = #tpu.dot_dimension_numbers<[1], [0], [0], [1], [0, 0, 1, 1], [], []>} : vector<8x32xbf16>, vector<32x32xbf16>, vector<8x32xf32> -> vector<8x32xf32>
    %11 = arith.truncf %10 : vector<8x32xf32> to vector<8x32xbf16>
    %c0_13 = arith.constant 0 : index
    %c0_14 = arith.constant 0 : index
    %12 = vector.load %arg7[%c0_13, %c0_14] : memref<32x32xbf16, #tpu.memory_space<vmem>>, vector<32x32xbf16>
    %cst_15 = arith.constant dense<0.000000e+00> : vector<8x32xf32>
    %13 = tpu.matmul %5, %12, %cst_15 {dimension_numbers = #tpu.dot_dimension_numbers<[1], [0], [0], [1], [0, 0, 1, 1], [], []>} : vector<8x32xbf16>, vector<32x32xbf16>, vector<8x32xf32> -> vector<8x32xf32>
    %14 = arith.truncf %13 : vector<8x32xf32> to vector<8x32xbf16>
    %15 = vector.shape_cast %8 : vector<8x32xbf16> to vector<1x8x32xbf16>
    %16 = vector.shape_cast %11 : vector<8x32xbf16> to vector<1x8x32xbf16>
    %17 = vector.shape_cast %14 : vector<8x32xbf16> to vector<1x8x32xbf16>
    %c0_16 = arith.constant 0 : index
    %c0_17 = arith.constant 0 : index
    %18 = vector.load %arg4[%c0_16, %c0_17] : memref<8x8xf32, #tpu.memory_space<vmem>>, vector<8x8xf32>
    %19 = vector.extract_strided_slice %16 {offsets = [0, 0, 0], sizes = [1, 8, 8], strides = [1, 1, 1]} : vector<1x8x32xbf16> to vector<1x8x8xbf16>
    %20 = vector.extract_strided_slice %15 {offsets = [0, 0, 0], sizes = [1, 8, 8], strides = [1, 1, 1]} : vector<1x8x32xbf16> to vector<1x8x8xbf16>
    %21 = vector.extract_strided_slice %17 {offsets = [0, 0, 0], sizes = [1, 8, 8], strides = [1, 1, 1]} : vector<1x8x32xbf16> to vector<1x8x8xbf16>
    "tpu.trace_start"() <{level = 10 : i32, message = "bqd,bkd->bqk"}> : () -> ()
    %cst_18 = arith.constant dense<0.000000e+00> : vector<1x8x8xf32>
    %22 = tpu.matmul %19, %20, %cst_18 {dimension_numbers = #tpu.dot_dimension_numbers<[2], [2], [1], [1], [0, 0, 0, 1, 1, 1], [0], [0]>} : vector<1x8x8xbf16>, vector<1x8x8xbf16>, vector<1x8x8xf32> -> vector<1x8x8xf32>
    "tpu.trace_stop"() : () -> ()
    %23 = vector.shape_cast %18 : vector<8x8xf32> to vector<1x8x8xf32>
    %24 = arith.addf %22, %23 : vector<1x8x8xf32>
    %cst_19 = arith.constant dense<0xFF800000> : vector<1x8xf32>
    %25 = vector.multi_reduction <maximumf>, %24, %cst_19 [2] : vector<1x8x8xf32> to vector<1x8xf32>
    %26 = vector.shape_cast %25 : vector<1x8xf32> to vector<1x8x1xf32>
    %27 = vector.broadcast %26 : vector<1x8x1xf32> to vector<1x8x8xf32>
    %28 = arith.subf %24, %27 : vector<1x8x8xf32>
    %29 = math.exp %28 : vector<1x8x8xf32>
    %cst_20 = arith.constant dense<0.000000e+00> : vector<1x8xf32>
    %30 = vector.multi_reduction <add>, %29, %cst_20 [2] : vector<1x8x8xf32> to vector<1x8xf32>
    %31 = vector.shape_cast %30 : vector<1x8xf32> to vector<1x8x1xf32>
    %32 = tpu.reciprocal %31 {approx = true} : vector<1x8x1xf32> -> vector<1x8x1xf32>
    %33 = vector.broadcast %32 : vector<1x8x1xf32> to vector<1x8x8xf32>
    %34 = arith.mulf %29, %33 : vector<1x8x8xf32>
    %35 = arith.truncf %34 : vector<1x8x8xf32> to vector<1x8x8xbf16>
    "tpu.trace_start"() <{level = 10 : i32, message = "bqk,bkd->bqd"}> : () -> ()
    %cst_21 = arith.constant dense<0.000000e+00> : vector<1x8x8xf32>
    %36 = tpu.matmul %35, %21, %cst_21 {dimension_numbers = #tpu.dot_dimension_numbers<[2], [1], [1], [2], [0, 0, 0, 1, 1, 2], [0], [0]>} : vector<1x8x8xbf16>, vector<1x8x8xbf16>, vector<1x8x8xf32> -> vector<1x8x8xf32>
    "tpu.trace_stop"() : () -> ()
    %37 = vector.shape_cast %36 : vector<1x8x8xf32> to vector<8x8xf32>
    %38 = arith.truncf %37 : vector<8x8xf32> to vector<8x8xbf16>
    %c0_22 = arith.constant 0 : index
    %c0_23 = arith.constant 0 : index
    %39 = vector.load %arg11[%c0_22, %c0_23] : memref<8x32xbf16, #tpu.memory_space<vmem>>, vector<8x8xbf16>
    tpu.vector_store %arg11[%c0_22, %c0_23], %38 {strides = array<i32>} : memref<8x32xbf16, #tpu.memory_space<vmem>>, vector<8x8xbf16>,
    %40 = vector.extract_strided_slice %16 {offsets = [0, 0, 8], sizes = [1, 8, 8], strides = [1, 1, 1]} : vector<1x8x32xbf16> to vector<1x8x8xbf16>
    %41 = vector.extract_strided_slice %15 {offsets = [0, 0, 8], sizes = [1, 8, 8], strides = [1, 1, 1]} : vector<1x8x32xbf16> to vector<1x8x8xbf16>
    %42 = vector.extract_strided_slice %17 {offsets = [0, 0, 8], sizes = [1, 8, 8], strides = [1, 1, 1]} : vector<1x8x32xbf16> to vector<1x8x8xbf16>
    "tpu.trace_start"() <{level = 10 : i32, message = "bqd,bkd->bqk"}> : () -> ()
    %cst_24 = arith.constant dense<0.000000e+00> : vector<1x8x8xf32>
    %43 = tpu.matmul %40, %41, %cst_24 {dimension_numbers = #tpu.dot_dimension_numbers<[2], [2], [1], [1], [0, 0, 0, 1, 1, 1], [0], [0]>} : vector<1x8x8xbf16>, vector<1x8x8xbf16>, vector<1x8x8xf32> -> vector<1x8x8xf32>
    "tpu.trace_stop"() : () -> ()
    %44 = vector.shape_cast %18 : vector<8x8xf32> to vector<1x8x8xf32>
    %45 = arith.addf %43, %44 : vector<1x8x8xf32>
    %cst_25 = arith.constant dense<0xFF800000> : vector<1x8xf32>
    %46 = vector.multi_reduction <maximumf>, %45, %cst_25 [2] : vector<1x8x8xf32> to vector<1x8xf32>
    %47 = vector.shape_cast %46 : vector<1x8xf32> to vector<1x8x1xf32>
    %48 = vector.broadcast %47 : vector<1x8x1xf32> to vector<1x8x8xf32>
    %49 = arith.subf %45, %48 : vector<1x8x8xf32>
    %50 = math.exp %49 : vector<1x8x8xf32>
    %cst_26 = arith.constant dense<0.000000e+00> : vector<1x8xf32>
    %51 = vector.multi_reduction <add>, %50, %cst_26 [2] : vector<1x8x8xf32> to vector<1x8xf32>
    %52 = vector.shape_cast %51 : vector<1x8xf32> to vector<1x8x1xf32>
    %53 = tpu.reciprocal %52 {approx = true} : vector<1x8x1xf32> -> vector<1x8x1xf32>
    %54 = vector.broadcast %53 : vector<1x8x1xf32> to vector<1x8x8xf32>
    %55 = arith.mulf %50, %54 : vector<1x8x8xf32>
    %56 = arith.truncf %55 : vector<1x8x8xf32> to vector<1x8x8xbf16>
    "tpu.trace_start"() <{level = 10 : i32, message = "bqk,bkd->bqd"}> : () -> ()
    %cst_27 = arith.constant dense<0.000000e+00> : vector<1x8x8xf32>
    %57 = tpu.matmul %56, %42, %cst_27 {dimension_numbers = #tpu.dot_dimension_numbers<[2], [1], [1], [2], [0, 0, 0, 1, 1, 2], [0], [0]>} : vector<1x8x8xbf16>, vector<1x8x8xbf16>, vector<1x8x8xf32> -> vector<1x8x8xf32>
    "tpu.trace_stop"() : () -> ()
    %58 = vector.shape_cast %57 : vector<1x8x8xf32> to vector<8x8xf32>
    %59 = arith.truncf %58 : vector<8x8xf32> to vector<8x8xbf16>
    %c0_28 = arith.constant 0 : index
    %c8 = arith.constant 8 : index
    %60 = vector.load %arg11[%c0_28, %c8] : memref<8x32xbf16, #tpu.memory_space<vmem>>, vector<8x8xbf16>
    tpu.vector_store %arg11[%c0_28, %c8], %59 {strides = array<i32>} : memref<8x32xbf16, #tpu.memory_space<vmem>>, vector<8x8xbf16>,
    %61 = vector.extract_strided_slice %16 {offsets = [0, 0, 16], sizes = [1, 8, 8], strides = [1, 1, 1]} : vector<1x8x32xbf16> to vector<1x8x8xbf16>
    %62 = vector.extract_strided_slice %15 {offsets = [0, 0, 16], sizes = [1, 8, 8], strides = [1, 1, 1]} : vector<1x8x32xbf16> to vector<1x8x8xbf16>
    %63 = vector.extract_strided_slice %17 {offsets = [0, 0, 16], sizes = [1, 8, 8], strides = [1, 1, 1]} : vector<1x8x32xbf16> to vector<1x8x8xbf16>
    "tpu.trace_start"() <{level = 10 : i32, message = "bqd,bkd->bqk"}> : () -> ()
    %cst_29 = arith.constant dense<0.000000e+00> : vector<1x8x8xf32>
    %64 = tpu.matmul %61, %62, %cst_29 {dimension_numbers = #tpu.dot_dimension_numbers<[2], [2], [1], [1], [0, 0, 0, 1, 1, 1], [0], [0]>} : vector<1x8x8xbf16>, vector<1x8x8xbf16>, vector<1x8x8xf32> -> vector<1x8x8xf32>
    "tpu.trace_stop"() : () -> ()
    %65 = vector.shape_cast %18 : vector<8x8xf32> to vector<1x8x8xf32>
    %66 = arith.addf %64, %65 : vector<1x8x8xf32>
    %cst_30 = arith.constant dense<0xFF800000> : vector<1x8xf32>
    %67 = vector.multi_reduction <maximumf>, %66, %cst_30 [2] : vector<1x8x8xf32> to vector<1x8xf32>
    %68 = vector.shape_cast %67 : vector<1x8xf32> to vector<1x8x1xf32>
    %69 = vector.broadcast %68 : vector<1x8x1xf32> to vector<1x8x8xf32>
    %70 = arith.subf %66, %69 : vector<1x8x8xf32>
    %71 = math.exp %70 : vector<1x8x8xf32>
    %cst_31 = arith.constant dense<0.000000e+00> : vector<1x8xf32>
    %72 = vector.multi_reduction <add>, %71, %cst_31 [2] : vector<1x8x8xf32> to vector<1x8xf32>
    %73 = vector.shape_cast %72 : vector<1x8xf32> to vector<1x8x1xf32>
    %74 = tpu.reciprocal %73 {approx = true} : vector<1x8x1xf32> -> vector<1x8x1xf32>
    %75 = vector.broadcast %74 : vector<1x8x1xf32> to vector<1x8x8xf32>
    %76 = arith.mulf %71, %75 : vector<1x8x8xf32>
    %77 = arith.truncf %76 : vector<1x8x8xf32> to vector<1x8x8xbf16>
    "tpu.trace_start"() <{level = 10 : i32, message = "bqk,bkd->bqd"}> : () -> ()
    %cst_32 = arith.constant dense<0.000000e+00> : vector<1x8x8xf32>
    %78 = tpu.matmul %77, %63, %cst_32 {dimension_numbers = #tpu.dot_dimension_numbers<[2], [1], [1], [2], [0, 0, 0, 1, 1, 2], [0], [0]>} : vector<1x8x8xbf16>, vector<1x8x8xbf16>, vector<1x8x8xf32> -> vector<1x8x8xf32>
    "tpu.trace_stop"() : () -> ()
    %79 = vector.shape_cast %78 : vector<1x8x8xf32> to vector<8x8xf32>
    %80 = arith.truncf %79 : vector<8x8xf32> to vector<8x8xbf16>
    %c0_33 = arith.constant 0 : index
    %c16 = arith.constant 16 : index
    %81 = vector.load %arg11[%c0_33, %c16] : memref<8x32xbf16, #tpu.memory_space<vmem>>, vector<8x8xbf16>
    tpu.vector_store %arg11[%c0_33, %c16], %80 {strides = array<i32>} : memref<8x32xbf16, #tpu.memory_space<vmem>>, vector<8x8xbf16>,
    %82 = vector.extract_strided_slice %16 {offsets = [0, 0, 24], sizes = [1, 8, 8], strides = [1, 1, 1]} : vector<1x8x32xbf16> to vector<1x8x8xbf16>
    %83 = vector.extract_strided_slice %15 {offsets = [0, 0, 24], sizes = [1, 8, 8], strides = [1, 1, 1]} : vector<1x8x32xbf16> to vector<1x8x8xbf16>
    %84 = vector.extract_strided_slice %17 {offsets = [0, 0, 24], sizes = [1, 8, 8], strides = [1, 1, 1]} : vector<1x8x32xbf16> to vector<1x8x8xbf16>
    "tpu.trace_start"() <{level = 10 : i32, message = "bqd,bkd->bqk"}> : () -> ()
    %cst_34 = arith.constant dense<0.000000e+00> : vector<1x8x8xf32>
    %85 = tpu.matmul %82, %83, %cst_34 {dimension_numbers = #tpu.dot_dimension_numbers<[2], [2], [1], [1], [0, 0, 0, 1, 1, 1], [0], [0]>} : vector<1x8x8xbf16>, vector<1x8x8xbf16>, vector<1x8x8xf32> -> vector<1x8x8xf32>
    "tpu.trace_stop"() : () -> ()
    %86 = vector.shape_cast %18 : vector<8x8xf32> to vector<1x8x8xf32>
    %87 = arith.addf %85, %86 : vector<1x8x8xf32>
    %cst_35 = arith.constant dense<0xFF800000> : vector<1x8xf32>
    %88 = vector.multi_reduction <maximumf>, %87, %cst_35 [2] : vector<1x8x8xf32> to vector<1x8xf32>
    %89 = vector.shape_cast %88 : vector<1x8xf32> to vector<1x8x1xf32>
    %90 = vector.broadcast %89 : vector<1x8x1xf32> to vector<1x8x8xf32>
    %91 = arith.subf %87, %90 : vector<1x8x8xf32>
    %92 = math.exp %91 : vector<1x8x8xf32>
    %cst_36 = arith.constant dense<0.000000e+00> : vector<1x8xf32>
    %93 = vector.multi_reduction <add>, %92, %cst_36 [2] : vector<1x8x8xf32> to vector<1x8xf32>
    %94 = vector.shape_cast %93 : vector<1x8xf32> to vector<1x8x1xf32>
    %95 = tpu.reciprocal %94 {approx = true} : vector<1x8x1xf32> -> vector<1x8x1xf32>
    %96 = vector.broadcast %95 : vector<1x8x1xf32> to vector<1x8x8xf32>
    %97 = arith.mulf %92, %96 : vector<1x8x8xf32>
    %98 = arith.truncf %97 : vector<1x8x8xf32> to vector<1x8x8xbf16>
    "tpu.trace_start"() <{level = 10 : i32, message = "bqk,bkd->bqd"}> : () -> ()
    %cst_37 = arith.constant dense<0.000000e+00> : vector<1x8x8xf32>
    %99 = tpu.matmul %98, %84, %cst_37 {dimension_numbers = #tpu.dot_dimension_numbers<[2], [1], [1], [2], [0, 0, 0, 1, 1, 2], [0], [0]>} : vector<1x8x8xbf16>, vector<1x8x8xbf16>, vector<1x8x8xf32> -> vector<1x8x8xf32>
    "tpu.trace_stop"() : () -> ()
    %100 = vector.shape_cast %99 : vector<1x8x8xf32> to vector<8x8xf32>
    %101 = arith.truncf %100 : vector<8x8xf32> to vector<8x8xbf16>
    %c0_38 = arith.constant 0 : index
    %c24 = arith.constant 24 : index
    %102 = vector.load %arg11[%c0_38, %c24] : memref<8x32xbf16, #tpu.memory_space<vmem>>, vector<8x8xbf16>
    tpu.vector_store %arg11[%c0_38, %c24], %101 {strides = array<i32>} : memref<8x32xbf16, #tpu.memory_space<vmem>>, vector<8x8xbf16>,
    %c0_39 = arith.constant 0 : index
    %c0_40 = arith.constant 0 : index
    %103 = vector.load %arg11[%c0_39, %c0_40] : memref<8x32xbf16, #tpu.memory_space<vmem>>, vector<8x32xbf16>
    %c0_41 = arith.constant 0 : index
    %c0_42 = arith.constant 0 : index
    %104 = vector.load %arg8[%c0_41, %c0_42] : memref<32x32xbf16, #tpu.memory_space<vmem>>, vector<32x32xbf16>
    %cst_43 = arith.constant dense<0.000000e+00> : vector<8x32xf32>
    %105 = tpu.matmul %103, %104, %cst_43 {dimension_numbers = #tpu.dot_dimension_numbers<[1], [0], [0], [1], [0, 0, 1, 1], [], []>} : vector<8x32xbf16>, vector<32x32xbf16>, vector<8x32xf32> -> vector<8x32xf32>
    %c0_44 = arith.constant 0 : index
    %c0_45 = arith.constant 0 : index
    %106 = vector.load %arg9[%c0_44, %c0_45] : memref<1x32xf32, #tpu.memory_space<vmem>>, vector<1x32xf32>
    %107 = vector.broadcast %106 : vector<1x32xf32> to vector<8x32xf32>
    %108 = arith.addf %105, %107 : vector<8x32xf32>
    %109 = vector.shape_cast %108 : vector<8x32xf32> to vector<1x8x32xf32>
    %c0_46 = arith.constant 0 : index
    %c0_47 = arith.constant 0 : index
    %c0_48 = arith.constant 0 : index
    %110 = vector.load %arg10[%c0_46, %c0_47, %c0_48] : memref<1x8x32xf32, #tpu.memory_space<vmem>>, vector<1x8x32xf32>
    tpu.vector_store %arg10[%c0_46, %c0_47, %c0_48], %109 {strides = array<i32>} : memref<1x8x32xf32, #tpu.memory_space<vmem>>, vector<1x8x32xf32>,
    return
  }
  func.func @transform_0(%arg0: i32) -> (i32, i32, i32) {
    %c0_i32 = arith.constant 0 : i32
    %c0_i32_0 = arith.constant 0 : i32
    %c0_i32_1 = arith.constant 0 : i32
    return %arg0, %c0_i32, %c0_i32_0 : i32, i32, i32
  }
  func.func @transform_1(%arg0: i32) -> (i32, i32, i32) {
    %c0_i32 = arith.constant 0 : i32
    %c0_i32_0 = arith.constant 0 : i32
    %c0_i32_1 = arith.constant 0 : i32
    return %arg0, %c0_i32, %c0_i32_0 : i32, i32, i32
  }
  func.func @transform_2(%arg0: i32) -> (i32, i32, i32) {
    %c0_i32 = arith.constant 0 : i32
    %c0_i32_0 = arith.constant 0 : i32
    %c0_i32_1 = arith.constant 0 : i32
    return %arg0, %c0_i32, %c0_i32_0 : i32, i32, i32
  }
  func.func @transform_3(%arg0: i32) -> (i32, i32) {
    %c0_i32 = arith.constant 0 : i32
    %c0_i32_0 = arith.constant 0 : i32
    %c0_i32_1 = arith.constant 0 : i32
    return %c0_i32, %c0_i32_0 : i32, i32
  }
  func.func @transform_4(%arg0: i32) -> (i32, i32) {
    %c0_i32 = arith.constant 0 : i32
    %c0_i32_0 = arith.constant 0 : i32
    %c0_i32_1 = arith.constant 0 : i32
    return %c0_i32, %c0_i32_0 : i32, i32
  }
  func.func @transform_5(%arg0: i32) -> (i32, i32) {
    %c0_i32 = arith.constant 0 : i32
    %c0_i32_0 = arith.constant 0 : i32
    %c0_i32_1 = arith.constant 0 : i32
    return %c0_i32, %c0_i32_0 : i32, i32
  }
  func.func @transform_6(%arg0: i32) -> (i32, i32) {
    %c0_i32 = arith.constant 0 : i32
    %c0_i32_0 = arith.constant 0 : i32
    %c0_i32_1 = arith.constant 0 : i32
    return %c0_i32, %c0_i32_0 : i32, i32
  }
  func.func @transform_7(%arg0: i32) -> (i32, i32) {
    %c0_i32 = arith.constant 0 : i32
    %c0_i32_0 = arith.constant 0 : i32
    %c0_i32_1 = arith.constant 0 : i32
    return %c0_i32, %c0_i32_0 : i32, i32
  }
  func.func @transform_8(%arg0: i32) -> (i32, i32) {
    %c0_i32 = arith.constant 0 : i32
    %c0_i32_0 = arith.constant 0 : i32
    %c0_i32_1 = arith.constant 0 : i32
    return %c0_i32, %c0_i32_0 : i32, i32
  }
  func.func @transform_9(%arg0: i32) -> (i32, i32, i32) {
    %c0_i32 = arith.constant 0 : i32
    %c0_i32_0 = arith.constant 0 : i32
    %c0_i32_1 = arith.constant 0 : i32
    return %arg0, %c0_i32, %c0_i32_0 : i32, i32, i32
  }
}

</mosaic_0001>

<llo_original>
// kernel: tpu_custom_call.1
$region0: #{tpu_custom_call.1}
  #allocation0 [shape = 'u32[]', space=smem, size = 0x4, offset = 0x4, fixed_abs, tag = 'smem constant byte address 0x4 - core index']
  #allocation1 [shape = 'u32[144,128]{1,0:T(1,128)}', space=vmem, size = 0x12000, scoped, tag = 'internal scratch']
  #allocation2 [shape = 'bf16[8,32]{1,0:T(8,128)(2,1)}', space=vmem, size = 0x800, scoped, tag = 'scratch operand']
  %s0 = inlined_call_operand.hbm [shape: bf16[2,8,32], index: 0, kind: input, shape index: {}]
  %s1 = inlined_call_operand.hbm [shape: bf16[2,8,32], index: 1, kind: input, shape index: {}]
  %s2 = inlined_call_operand.hbm [shape: bf16[2,8,32], index: 2, kind: input, shape index: {}]
  %s3 = inlined_call_operand.hbm [shape: f32[8,8], index: 3, kind: input, shape index: {}]
  %s4 = inlined_call_operand.hbm [shape: bf16[32,32], index: 4, kind: input, shape index: {}]
  %s5 = inlined_call_operand.vmem [shape: bf16[32,32], index: 5, kind: input, shape index: {}]
  %s6 = inlined_call_operand.hbm [shape: bf16[32,32], index: 6, kind: input, shape index: {}]
  %s7 = inlined_call_operand.hbm [shape: bf16[32,32], index: 7, kind: input, shape index: {}]
  %s8 = inlined_call_operand.vmem [shape: f32[1,32], index: 8, kind: input, shape index: {}]
  %s9 = inlined_call_operand.hbm [shape: f32[2,8,32], index: 9, kind: output, shape index: {}]
  %s10 = sld [smem:[#allocation0]]
  $region97: #{tpu_custom_call.1} parent=0
    _
  %s12 = ssub.s32 1, %s10
  %s13 = scalar_select 0, %s12, %s10
  $region1: #{tpu_custom_call.1} parent=0
    #allocation3 [shape = 'u8[4096]{0}', space=vmem, size = 0x1000, scoped, tag = 'input window, operand 0']
    #allocation4 [shape = 's32[2]{0}', space=sflag, size = 0x8, scoped, tag = 'scoped memory for tpu_custom_call.1']
    #allocation5 [shape = 's32[2]{0}', space=sflag, size = 0x8, scoped, tag = 'scoped memory for tpu_custom_call.1']
    #allocation6 [shape = 'u8[4096]{0}', space=vmem, size = 0x1000, scoped, tag = 'input window, operand 1']
    #allocation7 [shape = 's32[2]{0}', space=sflag, size = 0x8, scoped, tag = 'scoped memory for tpu_custom_call.1']
    #allocation8 [shape = 'u8[4096]{0}', space=vmem, size = 0x1000, scoped, tag = 'input window, operand 2']
    #allocation9 [shape = 'u8[4096]{0}', space=vmem, size = 0x1000, scoped, tag = 'input window, operand 3, single buffered']
    #allocation10 [shape = 's32[1]{0}', space=sflag, size = 0x4, scoped, tag = 'scoped memory for tpu_custom_call.1']
    #allocation11 [shape = 'u8[8192]{0}', space=vmem, size = 0x2000, scoped, tag = 'input window, operand 4, single buffered']
    #allocation12 [shape = 'u8[8192]{0}', space=vmem, size = 0x2000, scoped, tag = 'input window, operand 6, single buffered']
    #allocation13 [shape = 's32[1]{0}', space=sflag, size = 0x4, scoped, tag = 'scoped memory for tpu_custom_call.1']
    #allocation14 [shape = 'u8[8192]{0}', space=vmem, size = 0x2000, scoped, tag = 'input window, operand 7, single buffered']
    #allocation15 [shape = 'u8[8192]{0}', space=vmem, size = 0x2000, scoped, tag = 'output window, operand 0']
    %14 = vsyncpa [#allocation4], 0
    %s15 = scalar_lea.sflag [#allocation4], 1
    %16 = vsyncpa %s15, 0
    %17 = vsyncpa [#allocation7], 0
    %s18 = scalar_lea.sflag [#allocation7], 1
    %19 = vsyncpa %s18, 0
    %20 = vsyncpa [#allocation10], 0
    %21 = vsyncpa [#allocation13], 0
    %22 = vsyncpa [#allocation5], 0
    %s23 = scalar_lea.sflag [#allocation5], 1
    %24 = vsyncpa %s23, 0
    loop: start=0, step=1, limit=4
    $region2: #{tpu_custom_call.1} parent=1 // loop_pre_header
      _
    $region3: #{tpu_custom_call.1} parent=1 // loop_header
      %s26 = sphi 0, %s30
      %p27 = scmp.ge.s32.totalorder %s26, 4
      %s36 = sphi 0, %s38
      %s39 = sphi 0, %s36
      %s40 = sphi 0, %s39
      %s56 = sphi 0, %s40
      %s62 = sphi 0, %s64
      %s65 = sphi 0, %s62
      %s66 = sphi 0, %s65
      %s82 = sphi 0, %s66
      %s88 = sphi 0, %s90
      %s91 = sphi 0, %s88
      %s92 = sphi 0, %s91
      %s108 = sphi 0, %s92
      %s112 = sphi 0, %s112
      %s114 = sphi 0, %s112
      %s115 = sphi 0, %s114
      %s129 = sphi 0, %s115
      %s133 = sphi 0, %s133
      %s135 = sphi 0, %s133
      %s136 = sphi 0, %s135
      %s150 = sphi 0, %s136
      %s154 = sphi 0, %s154
      %s156 = sphi 0, %s154
      %s157 = sphi 0, %s156
      %s171 = sphi 0, %s157
      %s175 = sphi 0, %s175
      %s177 = sphi 0, %s175
      %s178 = sphi 0, %s177
      %s192 = sphi 0, %s178
      %s196 = sphi 0, %s196
      %s198 = sphi 0, %s196
      %s199 = sphi 0, %s198
      %s213 = sphi 0, %s199
      %s217 = sphi 0, %s217
      %s219 = sphi 0, %s217
      %s220 = sphi 0, %s219
      %s234 = sphi 0, %s220
      %s240 = sphi 0, %s242
      %s243 = sphi 0, %s240
      %s244 = sphi 0, %s243
      %s260 = sphi 0, %s244
    $region4: #{tpu_custom_call.1} parent=1 // loop_header_branch
      %29 = sbr.rel (%p27) target = $region8
    $region5: #{tpu_custom_call.1} parent=1 // loop_body
      %s31 = ssub.s32 %s26, 1
      %s32 = ssub.s32 %s26, 2
      %s33 = sadd.s32 %s26, 1
      %s34 = ssub.s32 %s26, %s33
      %p35 = scmp.eq.s32.totalorder %s34, 0
      %s37 = sadd.s32 %s36, 1
      %s38 = scalar_select %p35, %s36, %s37
      %p41 = pneg %p35
      %p42 = scmp.eq.s32.totalorder %s26, 1
      %p43 = por %p41, %p42
      %p44 = scmp.ne.s32.totalorder %s36, %s39
      %p45 = scmp.eq.s32.totalorder %s26, 0
      %p46 = por %p44, %p45
      %p47 = scmp.ne.s32.totalorder %s36, %s39
      %p48 = scmp.eq.s32.totalorder %s31, 1
      %p49 = por %p47, %p48
      %p50 = scmp.ne.s32.totalorder %s39, %s40
      %p51 = scmp.eq.s32.totalorder %s31, 0
      %p52 = por %p50, %p51
      %p53 = scmp.ne.s32.totalorder %s39, %s40
      %p54 = scmp.eq.s32.totalorder %s32, 1
      %p55 = por %p53, %p54
      %p57 = scmp.ne.s32.totalorder %s40, %s56
      %p58 = scmp.eq.s32.totalorder %s32, 0
      %p59 = por %p57, %p58
      %s60 = ssub.s32 %s26, %s33
      %p61 = scmp.eq.s32.totalorder %s60, 0
      %s63 = sadd.s32 %s62, 1
      %s64 = scalar_select %p61, %s62, %s63
      %p67 = pneg %p61
      %p68 = scmp.eq.s32.totalorder %s26, 1
      %p69 = por %p67, %p68
      %p70 = scmp.ne.s32.totalorder %s62, %s65
      %p71 = scmp.eq.s32.totalorder %s26, 0
      %p72 = por %p70, %p71
      %p73 = scmp.ne.s32.totalorder %s62, %s65
      %p74 = scmp.eq.s32.totalorder %s31, 1
      %p75 = por %p73, %p74
      %p76 = scmp.ne.s32.totalorder %s65, %s66
      %p77 = scmp.eq.s32.totalorder %s31, 0
      %p78 = por %p76, %p77
      %p79 = scmp.ne.s32.totalorder %s65, %s66
      %p80 = scmp.eq.s32.totalorder %s32, 1
      %p81 = por %p79, %p80
      %p83 = scmp.ne.s32.totalorder %s66, %s82
      %p84 = scmp.eq.s32.totalorder %s32, 0
      %p85 = por %p83, %p84
      %s86 = ssub.s32 %s26, %s33
      %p87 = scmp.eq.s32.totalorder %s86, 0
      %s89 = sadd.s32 %s88, 1
      %s90 = scalar_select %p87, %s88, %s89
      %p93 = pneg %p87
      %p94 = scmp.eq.s32.totalorder %s26, 1
      %p95 = por %p93, %p94
      %p96 = scmp.ne.s32.totalorder %s88, %s91
      %p97 = scmp.eq.s32.totalorder %s26, 0
      %p98 = por %p96, %p97
      %p99 = scmp.ne.s32.totalorder %s88, %s91
      %p100 = scmp.eq.s32.totalorder %s31, 1
      %p101 = por %p99, %p100
      %p102 = scmp.ne.s32.totalorder %s91, %s92
      %p103 = scmp.eq.s32.totalorder %s31, 0
      %p104 = por %p102, %p103
      %p105 = scmp.ne.s32.totalorder %s91, %s92
      %p106 = scmp.eq.s32.totalorder %s32, 1
      %p107 = por %p105, %p106
      %p109 = scmp.ne.s32.totalorder %s92, %s108
      %p110 = scmp.eq.s32.totalorder %s32, 0
      %p111 = por %p109, %p110
      %s113 = sadd.s32 %s112, 1
      %p116 = scmp.eq.s32.totalorder %s26, 1
      %p117 = scmp.ne.s32.totalorder %s112, %s114
      %p118 = scmp.eq.s32.totalorder %s26, 0
      %p119 = por %p117, %p118
      %p120 = scmp.ne.s32.totalorder %s112, %s114
      %p121 = scmp.eq.s32.totalorder %s31, 1
      %p122 = por %p120, %p121
      %p123 = scmp.ne.s32.totalorder %s114, %s115
      %p124 = scmp.eq.s32.totalorder %s31, 0
      %p125 = por %p123, %p124
      %p126 = scmp.ne.s32.totalorder %s114, %s115
      %p127 = scmp.eq.s32.totalorder %s32, 1
      %p128 = por %p126, %p127
      %p130 = scmp.ne.s32.totalorder %s115, %s129
      %p131 = scmp.eq.s32.totalorder %s32, 0
      %p132 = por %p130, %p131
      %s134 = sadd.s32 %s133, 1
      %p137 = scmp.eq.s32.totalorder %s26, 1
      %p138 = scmp.ne.s32.totalorder %s133, %s135
      %p139 = scmp.eq.s32.totalorder %s26, 0
      %p140 = por %p138, %p139
      %p141 = scmp.ne.s32.totalorder %s133, %s135
      %p142 = scmp.eq.s32.totalorder %s31, 1
      %p143 = por %p141, %p142
      %p144 = scmp.ne.s32.totalorder %s135, %s136
      %p145 = scmp.eq.s32.totalorder %s31, 0
      %p146 = por %p144, %p145
      %p147 = scmp.ne.s32.totalorder %s135, %s136
      %p148 = scmp.eq.s32.totalorder %s32, 1
      %p149 = por %p147, %p148
      %p151 = scmp.ne.s32.totalorder %s136, %s150
      %p152 = scmp.eq.s32.totalorder %s32, 0
      %p153 = por %p151, %p152
      %s155 = sadd.s32 %s154, 1
      %p158 = scmp.eq.s32.totalorder %s26, 1
      %p159 = scmp.ne.s32.totalorder %s154, %s156
      %p160 = scmp.eq.s32.totalorder %s26, 0
      %p161 = por %p159, %p160
      %p162 = scmp.ne.s32.totalorder %s154, %s156
      %p163 = scmp.eq.s32.totalorder %s31, 1
      %p164 = por %p162, %p163
      %p165 = scmp.ne.s32.totalorder %s156, %s157
      %p166 = scmp.eq.s32.totalorder %s31, 0
      %p167 = por %p165, %p166
      %p168 = scmp.ne.s32.totalorder %s156, %s157
      %p169 = scmp.eq.s32.totalorder %s32, 1
      %p170 = por %p168, %p169
      %p172 = scmp.ne.s32.totalorder %s157, %s171
      %p173 = scmp.eq.s32.totalorder %s32, 0
      %p174 = por %p172, %p173
      %s176 = sadd.s32 %s175, 1
      %p179 = scmp.eq.s32.totalorder %s26, 1
      %p180 = scmp.ne.s32.totalorder %s175, %s177
      %p181 = scmp.eq.s32.totalorder %s26, 0
      %p182 = por %p180, %p181
      %p183 = scmp.ne.s32.totalorder %s175, %s177
      %p184 = scmp.eq.s32.totalorder %s31, 1
      %p185 = por %p183, %p184
      %p186 = scmp.ne.s32.totalorder %s177, %s178
      %p187 = scmp.eq.s32.totalorder %s31, 0
      %p188 = por %p186, %p187
      %p189 = scmp.ne.s32.totalorder %s177, %s178
      %p190 = scmp.eq.s32.totalorder %s32, 1
      %p191 = por %p189, %p190
      %p193 = scmp.ne.s32.totalorder %s178, %s192
      %p194 = scmp.eq.s32.totalorder %s32, 0
      %p195 = por %p193, %p194
      %s197 = sadd.s32 %s196, 1
      %p200 = scmp.eq.s32.totalorder %s26, 1
      %p201 = scmp.ne.s32.totalorder %s196, %s198
      %p202 = scmp.eq.s32.totalorder %s26, 0
      %p203 = por %p201, %p202
      %p204 = scmp.ne.s32.totalorder %s196, %s198
      %p205 = scmp.eq.s32.totalorder %s31, 1
      %p206 = por %p204, %p205
      %p207 = scmp.ne.s32.totalorder %s198, %s199
      %p208 = scmp.eq.s32.totalorder %s31, 0
      %p209 = por %p207, %p208
      %p210 = scmp.ne.s32.totalorder %s198, %s199
      %p211 = scmp.eq.s32.totalorder %s32, 1
      %p212 = por %p210, %p211
      %p214 = scmp.ne.s32.totalorder %s199, %s213
      %p215 = scmp.eq.s32.totalorder %s32, 0
      %p216 = por %p214, %p215
      %s218 = sadd.s32 %s217, 1
      %p221 = scmp.eq.s32.totalorder %s26, 1
      %p222 = scmp.ne.s32.totalorder %s217, %s219
      %p223 = scmp.eq.s32.totalorder %s26, 0
      %p224 = por %p222, %p223
      %p225 = scmp.ne.s32.totalorder %s217, %s219
      %p226 = scmp.eq.s32.totalorder %s31, 1
      %p227 = por %p225, %p226
      %p228 = scmp.ne.s32.totalorder %s219, %s220
      %p229 = scmp.eq.s32.totalorder %s31, 0
      %p230 = por %p228, %p229
      %p231 = scmp.ne.s32.totalorder %s219, %s220
      %p232 = scmp.eq.s32.totalorder %s32, 1
      %p233 = por %p231, %p232
      %p235 = scmp.ne.s32.totalorder %s220, %s234
      %p236 = scmp.eq.s32.totalorder %s32, 0
      %p237 = por %p235, %p236
      %s238 = ssub.s32 %s26, %s33
      %p239 = scmp.eq.s32.totalorder %s238, 0
      %s241 = sadd.s32 %s240, 1
      %s242 = scalar_select %p239, %s240, %s241
      %p245 = pneg %p239
      %p246 = scmp.eq.s32.totalorder %s26, 1
      %p247 = por %p245, %p246
      %p248 = scmp.ne.s32.totalorder %s240, %s243
      %p249 = scmp.eq.s32.totalorder %s26, 0
      %p250 = por %p248, %p249
      %p251 = scmp.ne.s32.totalorder %s240, %s243
      %p252 = scmp.eq.s32.totalorder %s31, 1
      %p253 = por %p251, %p252
      %p254 = scmp.ne.s32.totalorder %s243, %s244
      %p255 = scmp.eq.s32.totalorder %s31, 0
      %p256 = por %p254, %p255
      %p257 = scmp.ne.s32.totalorder %s243, %s244
      %p258 = scmp.eq.s32.totalorder %s32, 1
      %p259 = por %p257, %p258
      %p261 = scmp.ne.s32.totalorder %s244, %s260
      %p262 = scmp.eq.s32.totalorder %s32, 0
      %p263 = por %p261, %p262
      %p264 = scmp.le.s32.totalorder 1, %s26
      %p265 = scmp.lt.s32.totalorder %s26, 3
      %p266 = pnand %p264, %p265
      %p267 = pneg %p266
      // Predicated region
      $region9: #{tpu_custom_call.1} parent=5 // pred_check
        _
      $region10: #{tpu_custom_call.1} parent=5 // pred_check_branch
        %269 = sbr.rel (%p266) target = $region12
      $region11: #{tpu_custom_call.1} parent=5 // pred_region
        %s270 = ssub.s32 %s26, 1
        // Predicated region
        $region13: #{tpu_custom_call.1} parent=11 // pred_check
          %p271 = pneg %p125
        $region14: #{tpu_custom_call.1} parent=11 // pred_check_branch
          %273 = sbr.rel (%p271) target = $region16
        $region15: #{tpu_custom_call.1} parent=11 // pred_region
          %s275 = ssub.s32 128, 128
          %276 = vsyncadd [#allocation10], %s275
          %s278 = sshll.u32 [#allocation9], 4
          %s279 = int_to_ptr.vmem [resolvable:$true] %s278
          %281 = dma.hbm_to_vmem [thread:$0]  %s3, 128, %s279, [#allocation10]
        $region16: #{tpu_custom_call.1} parent=11 // pred_fallthru
          _
        // Predicated region
        $region17: #{tpu_custom_call.1} parent=11 // pred_check
          %p282 = pneg %p146
        $region18: #{tpu_custom_call.1} parent=11 // pred_check_branch
          %284 = sbr.rel (%p282) target = $region20
        $region19: #{tpu_custom_call.1} parent=11 // pred_region
          %s286 = ssub.s32 256, 256
          %287 = vsyncadd [#allocation10], %s286
          %s288 = sshll.u32 [#allocation11], 4
          %s289 = int_to_ptr.vmem [resolvable:$true] %s288
          %294 = dma.hbm_to_vmem [thread:$0]  %s4, 256, %s289, [#allocation10], 64, 64, 4
        $region20: #{tpu_custom_call.1} parent=11 // pred_fallthru
          _
        // Predicated region
        $region21: #{tpu_custom_call.1} parent=11 // pred_check
          %p295 = pneg %p167
        $region22: #{tpu_custom_call.1} parent=11 // pred_check_branch
          %297 = sbr.rel (%p295) target = $region24
        $region23: #{tpu_custom_call.1} parent=11 // pred_region
          _
        $region24: #{tpu_custom_call.1} parent=11 // pred_fallthru
          _
        // Predicated region
        $region25: #{tpu_custom_call.1} parent=11 // pred_check
          %p298 = pneg %p188
        $region26: #{tpu_custom_call.1} parent=11 // pred_check_branch
          %300 = sbr.rel (%p298) target = $region28
        $region27: #{tpu_custom_call.1} parent=11 // pred_region
          %s302 = ssub.s32 256, 256
          %303 = vsyncadd [#allocation13], %s302
          %s304 = sshll.u32 [#allocation12], 4
          %s305 = int_to_ptr.vmem [resolvable:$true] %s304
          %310 = dma.hbm_to_vmem [thread:$0]  %s6, 256, %s305, [#allocation13], 64, 64, 4
        $region28: #{tpu_custom_call.1} parent=11 // pred_fallthru
          _
        // Predicated region
        $region29: #{tpu_custom_call.1} parent=11 // pred_check
          %p311 = pneg %p209
        $region30: #{tpu_custom_call.1} parent=11 // pred_check_branch
          %313 = sbr.rel (%p311) target = $region32
        $region31: #{tpu_custom_call.1} parent=11 // pred_region
          %s315 = ssub.s32 256, 256
          %316 = vsyncadd [#allocation13], %s315
          %s317 = sshll.u32 [#allocation14], 4
          %s318 = int_to_ptr.vmem [resolvable:$true] %s317
          %323 = dma.hbm_to_vmem [thread:$0]  %s7, 256, %s318, [#allocation13], 64, 64, 4
        $region32: #{tpu_custom_call.1} parent=11 // pred_fallthru
          _
        // Predicated region
        $region33: #{tpu_custom_call.1} parent=11 // pred_check
          %p324 = pneg %p230
        $region34: #{tpu_custom_call.1} parent=11 // pred_check_branch
          %326 = sbr.rel (%p324) target = $region36
        $region35: #{tpu_custom_call.1} parent=11 // pred_region
          _
        $region36: #{tpu_custom_call.1} parent=11 // pred_fallthru
          _
      $region12: #{tpu_custom_call.1} parent=5 // pred_fallthru
        _
      %p327 = scmp.lt.s32.totalorder %s26, 2
      // Predicated region
      $region37: #{tpu_custom_call.1} parent=5 // pred_check
        %p328 = pneg %p327
      $region38: #{tpu_custom_call.1} parent=5 // pred_check_branch
        %330 = sbr.rel (%p328) target = $region40
      $region39: #{tpu_custom_call.1} parent=5 // pred_region
        // Predicated region
        $region41: #{tpu_custom_call.1} parent=39 // pred_check
          %p331 = pneg %p46
        $region42: #{tpu_custom_call.1} parent=39 // pred_check_branch
          %333 = sbr.rel (%p331) target = $region44
        $region43: #{tpu_custom_call.1} parent=39 // pred_region
          %s334 = sand.u32 %s36, 1
          %s335 = scalar_lea.sflag [#allocation4], %s334
          %s336 = sand.u32 %s36, 1
          %s337 = smul.addr %s336, 4
          %s338 = scalar_lea.vmem [#allocation3], %s337
          %s340 = ssub.s32 64, 64
          %341 = vsyncadd %s335, %s340
          %s342 = smul.addr %s26, 64
          %s343 = scalar_lea.hbm %s0, %s342
          %s345 = sshll.u32 %s338, 4
          %s346 = int_to_ptr.vmem [resolvable:$true] %s345
          %348 = dma.hbm_to_vmem [thread:$0]  %s343, 64, %s346, %s335
        $region44: #{tpu_custom_call.1} parent=39 // pred_fallthru
          _
        // Predicated region
        $region45: #{tpu_custom_call.1} parent=39 // pred_check
          %p349 = pneg %p72
        $region46: #{tpu_custom_call.1} parent=39 // pred_check_branch
          %351 = sbr.rel (%p349) target = $region48
        $region47: #{tpu_custom_call.1} parent=39 // pred_region
          %s352 = sand.u32 %s26, 1
          %s353 = scalar_lea.sflag [#allocation7], %s352
          %s354 = sand.u32 %s62, 1
          %s355 = smul.addr %s354, 4
          %s356 = scalar_lea.vmem [#allocation6], %s355
          %s358 = ssub.s32 64, 64
          %359 = vsyncadd %s353, %s358
          %s360 = smul.addr %s26, 64
          %s361 = scalar_lea.hbm %s1, %s360
          %s363 = sshll.u32 %s356, 4
          %s364 = int_to_ptr.vmem [resolvable:$true] %s363
          %366 = dma.hbm_to_vmem [thread:$0]  %s361, 64, %s364, %s353
        $region48: #{tpu_custom_call.1} parent=39 // pred_fallthru
          _
        // Predicated region
        $region49: #{tpu_custom_call.1} parent=39 // pred_check
          %p367 = pneg %p98
        $region50: #{tpu_custom_call.1} parent=39 // pred_check_branch
          %369 = sbr.rel (%p367) target = $region52
        $region51: #{tpu_custom_call.1} parent=39 // pred_region
          %s370 = sand.u32 %s26, 1
          %s371 = scalar_lea.sflag [#allocation7], %s370
          %s372 = sand.u32 %s88, 1
          %s373 = smul.addr %s372, 4
          %s374 = scalar_lea.vmem [#allocation8], %s373
          %s376 = ssub.s32 64, 64
          %377 = vsyncadd %s371, %s376
          %s378 = smul.addr %s26, 64
          %s379 = scalar_lea.hbm %s2, %s378
          %s381 = sshll.u32 %s374, 4
          %s382 = int_to_ptr.vmem [resolvable:$true] %s381
          %384 = dma.hbm_to_vmem [thread:$0]  %s379, 64, %s382, %s371
        $region52: #{tpu_custom_call.1} parent=39 // pred_fallthru
          _
      $region40: #{tpu_custom_call.1} parent=5 // pred_fallthru
        _
      %p385 = scmp.le.s32.totalorder 1, %s26
      %p386 = scmp.lt.s32.totalorder %s26, 3
      %p387 = pnand %p385, %p386
      %p388 = pneg %p387
      // Predicated region
      $region53: #{tpu_custom_call.1} parent=5 // pred_check
        _
      $region54: #{tpu_custom_call.1} parent=5 // pred_check_branch
        %390 = sbr.rel (%p387) target = $region56
      $region55: #{tpu_custom_call.1} parent=5 // pred_region
        %s391 = ssub.s32 %s26, 1
        %s392 = sand.u32 %s39, 1
        %s393 = scalar_lea.sflag [#allocation4], %s392
        %s394 = sand.u32 %s39, 1
        %s395 = smul.addr %s394, 4
        %s396 = scalar_lea.vmem [#allocation3], %s395
        // Predicated region
        $region57: #{tpu_custom_call.1} parent=55 // pred_check
          %p397 = pneg %p52
        $region58: #{tpu_custom_call.1} parent=55 // pred_check_branch
          %399 = sbr.rel (%p397) target = $region60
        $region59: #{tpu_custom_call.1} parent=55 // pred_region
          %400 = dma.done %s393, 64
        $region60: #{tpu_custom_call.1} parent=55 // pred_fallthru
          _
        %s401 = sand.u32 %s31, 1
        %s402 = scalar_lea.sflag [#allocation7], %s401
        %s403 = sand.u32 %s65, 1
        %s404 = smul.addr %s403, 4
        %s405 = scalar_lea.vmem [#allocation6], %s404
        // Predicated region
        $region61: #{tpu_custom_call.1} parent=55 // pred_check
          %p406 = pneg %p78
        $region62: #{tpu_custom_call.1} parent=55 // pred_check_branch
          %408 = sbr.rel (%p406) target = $region64
        $region63: #{tpu_custom_call.1} parent=55 // pred_region
          %409 = dma.done %s402, 64
        $region64: #{tpu_custom_call.1} parent=55 // pred_fallthru
          _
        %s410 = sand.u32 %s31, 1
        %s411 = scalar_lea.sflag [#allocation7], %s410
        %s412 = sand.u32 %s91, 1
        %s413 = smul.addr %s412, 4
        %s414 = scalar_lea.vmem [#allocation8], %s413
        // Predicated region
        $region65: #{tpu_custom_call.1} parent=55 // pred_check
          %p415 = pneg %p104
        $region66: #{tpu_custom_call.1} parent=55 // pred_check_branch
          %417 = sbr.rel (%p415) target = $region68
        $region67: #{tpu_custom_call.1} parent=55 // pred_region
          %418 = dma.done %s411, 64
        $region68: #{tpu_custom_call.1} parent=55 // pred_fallthru
          _
        // Predicated region
        $region69: #{tpu_custom_call.1} parent=55 // pred_check
          %p419 = pneg %p125
        $region70: #{tpu_custom_call.1} parent=55 // pred_check_branch
          %421 = sbr.rel (%p419) target = $region72
        $region71: #{tpu_custom_call.1} parent=55 // pred_region
          %422 = dma.done [#allocation10], 128
        $region72: #{tpu_custom_call.1} parent=55 // pred_fallthru
          _
        // Predicated region
        $region73: #{tpu_custom_call.1} parent=55 // pred_check
          %p423 = pneg %p146
        $region74: #{tpu_custom_call.1} parent=55 // pred_check_branch
          %425 = sbr.rel (%p423) target = $region76
        $region75: #{tpu_custom_call.1} parent=55 // pred_region
          %426 = dma.done [#allocation10], 256
        $region76: #{tpu_custom_call.1} parent=55 // pred_fallthru
          _
        // Predicated region
        $region77: #{tpu_custom_call.1} parent=55 // pred_check
          %p427 = pneg %p188
        $region78: #{tpu_custom_call.1} parent=55 // pred_check_branch
          %429 = sbr.rel (%p427) target = $region80
        $region79: #{tpu_custom_call.1} parent=55 // pred_region
          %430 = dma.done [#allocation13], 256
        $region80: #{tpu_custom_call.1} parent=55 // pred_fallthru
          _
        // Predicated region
        $region81: #{tpu_custom_call.1} parent=55 // pred_check
          %p431 = pneg %p209
        $region82: #{tpu_custom_call.1} parent=55 // pred_check_branch
          %433 = sbr.rel (%p431) target = $region84
        $region83: #{tpu_custom_call.1} parent=55 // pred_region
          %434 = dma.done [#allocation13], 256
        $region84: #{tpu_custom_call.1} parent=55 // pred_fallthru
          _
        %s435 = sand.u32 %s39, 1
        %s436 = scalar_lea.sflag [#allocation4], %s435
        %s437 = sand.u32 %s39, 1
        %s438 = smul.addr %s437, 4
        %s439 = scalar_lea.vmem [#allocation3], %s438
        %p440 = pneg %p52
        %p441 = pneg %p49
        %s442 = sand.u32 %s31, 1
        %s443 = scalar_lea.sflag [#allocation7], %s442
        %s444 = sand.u32 %s65, 1
        %s445 = smul.addr %s444, 4
        %s446 = scalar_lea.vmem [#allocation6], %s445
        %p447 = pneg %p78
        %p448 = pneg %p75
        %s449 = sand.u32 %s31, 1
        %s450 = scalar_lea.sflag [#allocation7], %s449
        %s451 = sand.u32 %s91, 1
        %s452 = smul.addr %s451, 4
        %s453 = scalar_lea.vmem [#allocation8], %s452
        %p454 = pneg %p104
        %p455 = pneg %p101
        %p456 = pneg %p125
        %p457 = pneg %p122
        %p458 = pneg %p146
        %p459 = pneg %p143
        %p460 = pneg %p167
        %p461 = pneg %p164
        %p462 = pneg %p188
        %p463 = pneg %p185
        %p464 = pneg %p209
        %p465 = pneg %p206
        %p466 = pneg %p230
        %p467 = pneg %p227
        %p468 = pneg %p256
        %p469 = pneg %p253
        %s470 = sand.u32 %s243, 1
        %s471 = scalar_lea.sflag [#allocation5], %s470
        %s472 = sand.u32 %s243, 1
        %s473 = smul.addr %s472, 8
        %s474 = scalar_lea.vmem [#allocation15], %s473
        %v476 = vld [vmem:[%s396] sm:$0xf]
        %v477 = vld [vmem:[%s405] sm:$0xf]
        %v478 = vld [vmem:[%s414] sm:$0xf]
        %v479 = vld [vmem:[#allocation11] sm:$0xf]
        %v480 = vld [vmem:[#allocation11 + $0x4] sm:$0xf]
        %v481 = vld [vmem:[#allocation11 + $0x8] sm:$0xf]
        %v482 = vld [vmem:[#allocation11 + $0xc] sm:$0xf]
        %v487 = vunpack.c.l.b16 %v479
        %v488 = vunpack.c.l.b16 %v480
        %v489 = vunpack.c.l.b16 %v481
        %v490 = vunpack.c.l.b16 %v482
        %v491 = vpack.c.b16 %v488, %v487
        %v492 = vpack.c.b16 %v490, %v489
        %vm495 = vcmask 261120
        %v497 = vsel %vm495, %v476, 0
        %499 = vmatprep.subr.bf16.mxu0 0
        %500 = vmatpush1.bf16.msra.mxu0 %v491
        %501 = vmatprep.subr.bf16.mxu0 0
        %502 = vmatpush1.bf16.msra.mxu0 %v492
        %503 = vmatprep.subr.bf16.mxu0 0
        %504 = vmatpush1.bf16.msra.mxu0 0
        %505 = vmatprep.subr.bf16.mxu0 0
        %506 = vmatpush1.bf16.msra.mxu0 0
        %507 = vmatprep.subr.bf16.mxu0 0
        %508 = vmatpush1.bf16.msra.mxu0 0
        %509 = vmatprep.subr.bf16.mxu0 0
        %510 = vmatpush1.bf16.msra.mxu0 0
        %511 = vmatprep.subr.bf16.mxu0 0
        %512 = vmatpush1.bf16.msra.mxu0 0
        %513 = vmatprep.subr.bf16.mxu0 0
        %514 = vmatpush1.bf16.msra.mxu0 0
        %515 = vmatprep.subr.bf16.mxu0 0
        %516 = vmatpush1.bf16.msra.mxu0 0
        %517 = vmatprep.subr.bf16.mxu0 0
        %518 = vmatpush1.bf16.msra.mxu0 0
        %519 = vmatprep.subr.bf16.mxu0 0
        %520 = vmatpush1.bf16.msra.mxu0 0
        %521 = vmatprep.subr.bf16.mxu0 0
        %522 = vmatpush1.bf16.msra.mxu0 0
        %523 = vmatprep.subr.bf16.mxu0 0
        %524 = vmatpush1.bf16.msra.mxu0 0
        %525 = vmatprep.subr.bf16.mxu0 0
        %526 = vmatpush1.bf16.msra.mxu0 0
        %527 = vmatprep.subr.bf16.mxu0 0
        %528 = vmatpush1.bf16.msra.mxu0 0
        %529 = vmatprep.subr.bf16.mxu0 0
        %530 = vmatpush1.bf16.msra.mxu0 0
        %531 = vmatprep.mubr.bf16.mxu0 0
        %532 = vmatmul.mubr.bf16.gmra.mrb[0].mxu0 %v497
        %v533 = vpop.f32.mrb[0].mxu0
        %v534 = vadd.f32 0.0, %v533
        %v535 = vpop.f32.mrb[0].mxu0
        %v536 = vpop.f32.mrb[0].mxu0
        %v537 = vpop.f32.mrb[0].mxu0
        %538 = vdwg.mxu0
        %v539 = vpack.c.bf16 %v534, %v534
        %v540 = vld [vmem:[%s5] sm:$0xf]
        %v541 = vld [vmem:[%s5 + $0x4] sm:$0xf]
        %v542 = vld [vmem:[%s5 + $0x8] sm:$0xf]
        %v543 = vld [vmem:[%s5 + $0xc] sm:$0xf]
        %v548 = vunpack.c.l.b16 %v540
        %v549 = vunpack.c.l.b16 %v541
        %v550 = vunpack.c.l.b16 %v542
        %v551 = vunpack.c.l.b16 %v543
        %v552 = vpack.c.b16 %v549, %v548
        %v553 = vpack.c.b16 %v551, %v550
        %v557 = vsel %vm495, %v477, 0
        %559 = vmatprep.subr.bf16.mxu0 0
        %560 = vmatpush1.bf16.msra.mxu0 %v552
        %561 = vmatprep.subr.bf16.mxu0 0
        %562 = vmatpush1.bf16.msra.mxu0 %v553
        %563 = vmatprep.subr.bf16.mxu0 0
        %564 = vmatpush1.bf16.msra.mxu0 0
        %565 = vmatprep.subr.bf16.mxu0 0
        %566 = vmatpush1.bf16.msra.mxu0 0
        %567 = vmatprep.subr.bf16.mxu0 0
        %568 = vmatpush1.bf16.msra.mxu0 0
        %569 = vmatprep.subr.bf16.mxu0 0
        %570 = vmatpush1.bf16.msra.mxu0 0
        %571 = vmatprep.subr.bf16.mxu0 0
        %572 = vmatpush1.bf16.msra.mxu0 0
        %573 = vmatprep.subr.bf16.mxu0 0
        %574 = vmatpush1.bf16.msra.mxu0 0
        %575 = vmatprep.subr.bf16.mxu0 0
        %576 = vmatpush1.bf16.msra.mxu0 0
        %577 = vmatprep.subr.bf16.mxu0 0
        %578 = vmatpush1.bf16.msra.mxu0 0
        %579 = vmatprep.subr.bf16.mxu0 0
        %580 = vmatpush1.bf16.msra.mxu0 0
        %581 = vmatprep.subr.bf16.mxu0 0
        %582 = vmatpush1.bf16.msra.mxu0 0
        %583 = vmatprep.subr.bf16.mxu0 0
        %584 = vmatpush1.bf16.msra.mxu0 0
        %585 = vmatprep.subr.bf16.mxu0 0
        %586 = vmatpush1.bf16.msra.mxu0 0
        %587 = vmatprep.subr.bf16.mxu0 0
        %588 = vmatpush1.bf16.msra.mxu0 0
        %589 = vmatprep.subr.bf16.mxu0 0
        %590 = vmatpush1.bf16.msra.mxu0 0
        %591 = vmatprep.mubr.bf16.mxu0 0
        %592 = vmatmul.mubr.bf16.gmra.mrb[0].mxu0 %v557
        %v593 = vpop.f32.mrb[0].mxu0
        %v594 = vadd.f32 0.0, %v593
        %v595 = vpop.f32.mrb[0].mxu0
        %v596 = vpop.f32.mrb[0].mxu0
        %v597 = vpop.f32.mrb[0].mxu0
        %598 = vdwg.mxu0
        %v599 = vpack.c.bf16 %v594, %v594
        %v600 = vld [vmem:[#allocation12] sm:$0xf]
        %v601 = vld [vmem:[#allocation12 + $0x4] sm:$0xf]
        %v602 = vld [vmem:[#allocation12 + $0x8] sm:$0xf]
        %v603 = vld [vmem:[#allocation12 + $0xc] sm:$0xf]
        %v608 = vunpack.c.l.b16 %v600
        %v609 = vunpack.c.l.b16 %v601
        %v610 = vunpack.c.l.b16 %v602
        %v611 = vunpack.c.l.b16 %v603
        %v612 = vpack.c.b16 %v609, %v608
        %v613 = vpack.c.b16 %v611, %v610
        %v617 = vsel %vm495, %v478, 0
        %619 = vmatprep.subr.bf16.mxu0 0
        %620 = vmatpush1.bf16.msra.mxu0 %v612
        %621 = vmatprep.subr.bf16.mxu0 0
        %622 = vmatpush1.bf16.msra.mxu0 %v613
        %623 = vmatprep.subr.bf16.mxu0 0
        %624 = vmatpush1.bf16.msra.mxu0 0
        %625 = vmatprep.subr.bf16.mxu0 0
        %626 = vmatpush1.bf16.msra.mxu0 0
        %627 = vmatprep.subr.bf16.mxu0 0
        %628 = vmatpush1.bf16.msra.mxu0 0
        %629 = vmatprep.subr.bf16.mxu0 0
        %630 = vmatpush1.bf16.msra.mxu0 0
        %631 = vmatprep.subr.bf16.mxu0 0
        %632 = vmatpush1.bf16.msra.mxu0 0
        %633 = vmatprep.subr.bf16.mxu0 0
        %634 = vmatpush1.bf16.msra.mxu0 0
        %635 = vmatprep.subr.bf16.mxu0 0
        %636 = vmatpush1.bf16.msra.mxu0 0
        %637 = vmatprep.subr.bf16.mxu0 0
        %638 = vmatpush1.bf16.msra.mxu0 0
        %639 = vmatprep.subr.bf16.mxu0 0
        %640 = vmatpush1.bf16.msra.mxu0 0
        %641 = vmatprep.subr.bf16.mxu0 0
        %642 = vmatpush1.bf16.msra.mxu0 0
        %643 = vmatprep.subr.bf16.mxu0 0
        %644 = vmatpush1.bf16.msra.mxu0 0
        %645 = vmatprep.subr.bf16.mxu0 0
        %646 = vmatpush1.bf16.msra.mxu0 0
        %647 = vmatprep.subr.bf16.mxu0 0
        %648 = vmatpush1.bf16.msra.mxu0 0
        %649 = vmatprep.subr.bf16.mxu0 0
        %650 = vmatpush1.bf16.msra.mxu0 0
        %651 = vmatprep.mubr.bf16.mxu0 0
        %652 = vmatmul.mubr.bf16.gmra.mrb[0].mxu0 %v617
        %v653 = vpop.f32.mrb[0].mxu0
        %v654 = vadd.f32 0.0, %v653
        %v655 = vpop.f32.mrb[0].mxu0
        %v656 = vpop.f32.mrb[0].mxu0
        %v657 = vpop.f32.mrb[0].mxu0
        %658 = vdwg.mxu0
        %v659 = vpack.c.bf16 %v654, %v654
        %v660 = vld [vmem:[#allocation9] sm:$0xff]
        %vm661 = vcmask 64512
        %v663 = vsel %vm661, %v599, 0
        %v666 = vsel %vm661, %v539, 0
        %668 = vmatprep.subr.bf16.mxu0 0
        %669 = vmatpush1.bf16.xpose.msra.mxu0 %v666
        %670 = vmatprep.subr.bf16.mxu0 0
        %671 = vmatpush1.bf16.xpose.msra.mxu0 0
        %672 = vmatprep.subr.bf16.mxu0 0
        %673 = vmatpush1.bf16.xpose.msra.mxu0 0
        %674 = vmatprep.subr.bf16.mxu0 0
        %675 = vmatpush1.bf16.xpose.msra.mxu0 0
        %676 = vmatprep.subr.bf16.mxu0 0
        %677 = vmatpush1.bf16.xpose.msra.mxu0 0
        %678 = vmatprep.subr.bf16.mxu0 0
        %679 = vmatpush1.bf16.xpose.msra.mxu0 0
        %680 = vmatprep.subr.bf16.mxu0 0
        %681 = vmatpush1.bf16.xpose.msra.mxu0 0
        %682 = vmatprep.subr.bf16.mxu0 0
        %683 = vmatpush1.bf16.xpose.msra.mxu0 0
        %684 = vmatprep.subr.bf16.mxu0 0
        %685 = vmatpush1.bf16.xpose.msra.mxu0 0
        %686 = vmatprep.subr.bf16.mxu0 0
        %687 = vmatpush1.bf16.xpose.msra.mxu0 0
        %688 = vmatprep.subr.bf16.mxu0 0
        %689 = vmatpush1.bf16.xpose.msra.mxu0 0
        %690 = vmatprep.subr.bf16.mxu0 0
        %691 = vmatpush1.bf16.xpose.msra.mxu0 0
        %692 = vmatprep.subr.bf16.mxu0 0
        %693 = vmatpush1.bf16.xpose.msra.mxu0 0
        %694 = vmatprep.subr.bf16.mxu0 0
        %695 = vmatpush1.bf16.xpose.msra.mxu0 0
        %696 = vmatprep.subr.bf16.mxu0 0
        %697 = vmatpush1.bf16.xpose.msra.mxu0 0
        %698 = vmatprep.subr.bf16.mxu0 0
        %699 = vmatpush1.bf16.xpose.msra.mxu0 0
        %700 = vmatprep.mubr.bf16.mxu0 0
        %701 = vmatmul.mubr.bf16.gmra.mrb[0].mxu0 %v663
        %v702 = vpop.f32.mrb[0].mxu0
        %v703 = vadd.f32 %v660, %v702
        %v704 = vpop.f32.mrb[0].mxu0
        %v705 = vpop.f32.mrb[0].mxu0
        %v706 = vpop.f32.mrb[0].mxu0
        %707 = vdwg.mxu0
        %v708 = vsel %vm661, %v703, -inf
        %709 = vmax.xlane.f32.xlu0 %v708
        %v710 = vpop.xlane.xlu0 %709
        %v711 = vsub.f32 %v703, %v710
        %v712 = vmul.f32 %v711, 1.442695
        %v713 = vpow.pop %v712
        %v714 = vsel %vm661, %v713, 0.0
        %715 = vadd.xlane.f32.xlu0 %v714
        %v716 = vpop.xlane.xlu0 %715
        %v717 = vrcp.pop %v716
        %v718 = vmul.f32 %v713, %v717
        %v719 = vpack.c.bf16 %v718, %v718
        %v721 = vsel %vm661, %v719, 0
        %vm723 = vcmask 1043456
        %v725 = vsel %vm723, %v659, 0
        %727 = vmatprep.subr.bf16.mxu0 0
        %728 = vmatpush1.bf16.msra.mxu0 %v725
        %729 = vmatprep.subr.bf16.mxu0 0
        %730 = vmatpush1.bf16.msra.mxu0 0
        %731 = vmatprep.subr.bf16.mxu0 0
        %732 = vmatpush1.bf16.msra.mxu0 0
        %733 = vmatprep.subr.bf16.mxu0 0
        %734 = vmatpush1.bf16.msra.mxu0 0
        %735 = vmatprep.subr.bf16.mxu0 0
        %736 = vmatpush1.bf16.msra.mxu0 0
        %737 = vmatprep.subr.bf16.mxu0 0
        %738 = vmatpush1.bf16.msra.mxu0 0
        %739 = vmatprep.subr.bf16.mxu0 0
        %740 = vmatpush1.bf16.msra.mxu0 0
        %741 = vmatprep.subr.bf16.mxu0 0
        %742 = vmatpush1.bf16.msra.mxu0 0
        %743 = vmatprep.subr.bf16.mxu0 0
        %744 = vmatpush1.bf16.msra.mxu0 0
        %745 = vmatprep.subr.bf16.mxu0 0
        %746 = vmatpush1.bf16.msra.mxu0 0
        %747 = vmatprep.subr.bf16.mxu0 0
        %748 = vmatpush1.bf16.msra.mxu0 0
        %749 = vmatprep.subr.bf16.mxu0 0
        %750 = vmatpush1.bf16.msra.mxu0 0
        %751 = vmatprep.subr.bf16.mxu0 0
        %752 = vmatpush1.bf16.msra.mxu0 0
        %753 = vmatprep.subr.bf16.mxu0 0
        %754 = vmatpush1.bf16.msra.mxu0 0
        %755 = vmatprep.subr.bf16.mxu0 0
        %756 = vmatpush1.bf16.msra.mxu0 0
        %757 = vmatprep.subr.bf16.mxu0 0
        %758 = vmatpush1.bf16.msra.mxu0 0
        %759 = vmatprep.mubr.bf16.mxu0 0
        %760 = vmatmul.mubr.bf16.gmra.mrb[0].mxu0 %v721
        %v761 = vpop.f32.mrb[0].mxu0
        %v762 = vadd.f32 0.0, %v761
        %v763 = vpop.f32.mrb[0].mxu0
        %v764 = vpop.f32.mrb[0].mxu0
        %v765 = vpop.f32.mrb[0].mxu0
        %766 = vdwg.mxu0
        %v767 = vpack.c.bf16 %v762, %v762
        %vm768 = vcmask 60416
        %769 = vst.msk [vmem:[#allocation2] sm:$0xf] %vm768, %v767
        %771 = vrot.lane.b32.xlu0 %v599, 120
        %v772 = vpop.permute.xlu0 %771
        %774 = vrot.lane.b32.xlu0 %v539, 120
        %v775 = vpop.permute.xlu0 %774
        %v777 = vsel %vm661, %v772, 0
        %v780 = vsel %vm661, %v775, 0
        %782 = vmatprep.subr.bf16.mxu0 0
        %783 = vmatpush1.bf16.xpose.msra.mxu0 %v780
        %784 = vmatprep.subr.bf16.mxu0 0
        %785 = vmatpush1.bf16.xpose.msra.mxu0 0
        %786 = vmatprep.subr.bf16.mxu0 0
        %787 = vmatpush1.bf16.xpose.msra.mxu0 0
        %788 = vmatprep.subr.bf16.mxu0 0
        %789 = vmatpush1.bf16.xpose.msra.mxu0 0
        %790 = vmatprep.subr.bf16.mxu0 0
        %791 = vmatpush1.bf16.xpose.msra.mxu0 0
        %792 = vmatprep.subr.bf16.mxu0 0
        %793 = vmatpush1.bf16.xpose.msra.mxu0 0
        %794 = vmatprep.subr.bf16.mxu0 0
        %795 = vmatpush1.bf16.xpose.msra.mxu0 0
        %796 = vmatprep.subr.bf16.mxu0 0
        %797 = vmatpush1.bf16.xpose.msra.mxu0 0
        %798 = vmatprep.subr.bf16.mxu0 0
        %799 = vmatpush1.bf16.xpose.msra.mxu0 0
        %800 = vmatprep.subr.bf16.mxu0 0
        %801 = vmatpush1.bf16.xpose.msra.mxu0 0
        %802 = vmatprep.subr.bf16.mxu0 0
        %803 = vmatpush1.bf16.xpose.msra.mxu0 0
        %804 = vmatprep.subr.bf16.mxu0 0
        %805 = vmatpush1.bf16.xpose.msra.mxu0 0
        %806 = vmatprep.subr.bf16.mxu0 0
        %807 = vmatpush1.bf16.xpose.msra.mxu0 0
        %808 = vmatprep.subr.bf16.mxu0 0
        %809 = vmatpush1.bf16.xpose.msra.mxu0 0
        %810 = vmatprep.subr.bf16.mxu0 0
        %811 = vmatpush1.bf16.xpose.msra.mxu0 0
        %812 = vmatprep.subr.bf16.mxu0 0
        %813 = vmatpush1.bf16.xpose.msra.mxu0 0
        %814 = vmatprep.mubr.bf16.mxu0 0
        %815 = vmatmul.mubr.bf16.gmra.mrb[0].mxu0 %v777
        %v816 = vpop.f32.mrb[0].mxu0
        %v817 = vadd.f32 %v660, %v816
        %v818 = vpop.f32.mrb[0].mxu0
        %v819 = vpop.f32.mrb[0].mxu0
        %v820 = vpop.f32.mrb[0].mxu0
        %821 = vdwg.mxu0
        %v822 = vsel %vm661, %v817, -inf
        %823 = vmax.xlane.f32.xlu0 %v822
        %v824 = vpop.xlane.xlu0 %823
        %v825 = vsub.f32 %v817, %v824
        %v826 = vmul.f32 %v825, 1.442695
        %v827 = vpow.pop %v826
        %v828 = vsel %vm661, %v827, 0.0
        %829 = vadd.xlane.f32.xlu0 %v828
        %v830 = vpop.xlane.xlu0 %829
        %v831 = vrcp.pop %v830
        %v832 = vmul.f32 %v827, %v831
        %v833 = vpack.c.bf16 %v832, %v832
        %835 = vrot.lane.b32.xlu0 %v659, 120
        %v836 = vpop.permute.xlu0 %835
        %v838 = vsel %vm661, %v833, 0
        %v841 = vsel %vm723, %v836, 0
        %843 = vmatprep.subr.bf16.mxu0 0
        %844 = vmatpush1.bf16.msra.mxu0 %v841
        %845 = vmatprep.subr.bf16.mxu0 0
        %846 = vmatpush1.bf16.msra.mxu0 0
        %847 = vmatprep.subr.bf16.mxu0 0
        %848 = vmatpush1.bf16.msra.mxu0 0
        %849 = vmatprep.subr.bf16.mxu0 0
        %850 = vmatpush1.bf16.msra.mxu0 0
        %851 = vmatprep.subr.bf16.mxu0 0
        %852 = vmatpush1.bf16.msra.mxu0 0
        %853 = vmatprep.subr.bf16.mxu0 0
        %854 = vmatpush1.bf16.msra.mxu0 0
        %855 = vmatprep.subr.bf16.mxu0 0
        %856 = vmatpush1.bf16.msra.mxu0 0
        %857 = vmatprep.subr.bf16.mxu0 0
        %858 = vmatpush1.bf16.msra.mxu0 0
        %859 = vmatprep.subr.bf16.mxu0 0
        %860 = vmatpush1.bf16.msra.mxu0 0
        %861 = vmatprep.subr.bf16.mxu0 0
        %862 = vmatpush1.bf16.msra.mxu0 0
        %863 = vmatprep.subr.bf16.mxu0 0
        %864 = vmatpush1.bf16.msra.mxu0 0
        %865 = vmatprep.subr.bf16.mxu0 0
        %866 = vmatpush1.bf16.msra.mxu0 0
        %867 = vmatprep.subr.bf16.mxu0 0
        %868 = vmatpush1.bf16.msra.mxu0 0
        %869 = vmatprep.subr.bf16.mxu0 0
        %870 = vmatpush1.bf16.msra.mxu0 0
        %871 = vmatprep.subr.bf16.mxu0 0
        %872 = vmatpush1.bf16.msra.mxu0 0
        %873 = vmatprep.subr.bf16.mxu0 0
        %874 = vmatpush1.bf16.msra.mxu0 0
        %875 = vmatprep.mubr.bf16.mxu0 0
        %876 = vmatmul.mubr.bf16.gmra.mrb[0].mxu0 %v838
        %v877 = vpop.f32.mrb[0].mxu0
        %v878 = vadd.f32 0.0, %v877
        %v879 = vpop.f32.mrb[0].mxu0
        %v880 = vpop.f32.mrb[0].mxu0
        %v881 = vpop.f32.mrb[0].mxu0
        %882 = vdwg.mxu0
        %v883 = vpack.c.bf16 %v878, %v878
        %v885 = vunpack.c.l.b16 %v883
        %v886 = vpack.c.b16 %v885, %v885
        %887 = vrot.lane.b32.xlu0 %v886, 8
        %v888 = vpop.permute.xlu0 %887
        %vm890 = vcmask 126016
        %891 = vst.msk [vmem:[#allocation2] sm:$0xf] %vm890, %v888
        %892 = vrot.lane.b32.xlu0 %v599, 112
        %v893 = vpop.permute.xlu0 %892
        %894 = vrot.lane.b32.xlu0 %v539, 112
        %v895 = vpop.permute.xlu0 %894
        %v897 = vsel %vm661, %v893, 0
        %v900 = vsel %vm661, %v895, 0
        %902 = vmatprep.subr.bf16.mxu0 0
        %903 = vmatpush1.bf16.xpose.msra.mxu0 %v900
        %904 = vmatprep.subr.bf16.mxu0 0
        %905 = vmatpush1.bf16.xpose.msra.mxu0 0
        %906 = vmatprep.subr.bf16.mxu0 0
        %907 = vmatpush1.bf16.xpose.msra.mxu0 0
        %908 = vmatprep.subr.bf16.mxu0 0
        %909 = vmatpush1.bf16.xpose.msra.mxu0 0
        %910 = vmatprep.subr.bf16.mxu0 0
        %911 = vmatpush1.bf16.xpose.msra.mxu0 0
        %912 = vmatprep.subr.bf16.mxu0 0
        %913 = vmatpush1.bf16.xpose.msra.mxu0 0
        %914 = vmatprep.subr.bf16.mxu0 0
        %915 = vmatpush1.bf16.xpose.msra.mxu0 0
        %916 = vmatprep.subr.bf16.mxu0 0
        %917 = vmatpush1.bf16.xpose.msra.mxu0 0
        %918 = vmatprep.subr.bf16.mxu0 0
        %919 = vmatpush1.bf16.xpose.msra.mxu0 0
        %920 = vmatprep.subr.bf16.mxu0 0
        %921 = vmatpush1.bf16.xpose.msra.mxu0 0
        %922 = vmatprep.subr.bf16.mxu0 0
        %923 = vmatpush1.bf16.xpose.msra.mxu0 0
        %924 = vmatprep.subr.bf16.mxu0 0
        %925 = vmatpush1.bf16.xpose.msra.mxu0 0
        %926 = vmatprep.subr.bf16.mxu0 0
        %927 = vmatpush1.bf16.xpose.msra.mxu0 0
        %928 = vmatprep.subr.bf16.mxu0 0
        %929 = vmatpush1.bf16.xpose.msra.mxu0 0
        %930 = vmatprep.subr.bf16.mxu0 0
        %931 = vmatpush1.bf16.xpose.msra.mxu0 0
        %932 = vmatprep.subr.bf16.mxu0 0
        %933 = vmatpush1.bf16.xpose.msra.mxu0 0
        %934 = vmatprep.mubr.bf16.mxu0 0
        %935 = vmatmul.mubr.bf16.gmra.mrb[0].mxu0 %v897
        %v936 = vpop.f32.mrb[0].mxu0
        %v937 = vadd.f32 %v660, %v936
        %v938 = vpop.f32.mrb[0].mxu0
        %v939 = vpop.f32.mrb[0].mxu0
        %v940 = vpop.f32.mrb[0].mxu0
        %941 = vdwg.mxu0
        %v942 = vsel %vm661, %v937, -inf
        %943 = vmax.xlane.f32.xlu0 %v942
        %v944 = vpop.xlane.xlu0 %943
        %v945 = vsub.f32 %v937, %v944
        %v946 = vmul.f32 %v945, 1.442695
        %v947 = vpow.pop %v946
        %v948 = vsel %vm661, %v947, 0.0
        %949 = vadd.xlane.f32.xlu0 %v948
        %v950 = vpop.xlane.xlu0 %949
        %v951 = vrcp.pop %v950
        %v952 = vmul.f32 %v947, %v951
        %v953 = vpack.c.bf16 %v952, %v952
        %954 = vrot.lane.b32.xlu0 %v659, 112
        %v955 = vpop.permute.xlu0 %954
        %v957 = vsel %vm661, %v953, 0
        %v960 = vsel %vm723, %v955, 0
        %962 = vmatprep.subr.bf16.mxu0 0
        %963 = vmatpush1.bf16.msra.mxu0 %v960
        %964 = vmatprep.subr.bf16.mxu0 0
        %965 = vmatpush1.bf16.msra.mxu0 0
        %966 = vmatprep.subr.bf16.mxu0 0
        %967 = vmatpush1.bf16.msra.mxu0 0
        %968 = vmatprep.subr.bf16.mxu0 0
        %969 = vmatpush1.bf16.msra.mxu0 0
        %970 = vmatprep.subr.bf16.mxu0 0
        %971 = vmatpush1.bf16.msra.mxu0 0
        %972 = vmatprep.subr.bf16.mxu0 0
        %973 = vmatpush1.bf16.msra.mxu0 0
        %974 = vmatprep.subr.bf16.mxu0 0
        %975 = vmatpush1.bf16.msra.mxu0 0
        %976 = vmatprep.subr.bf16.mxu0 0
        %977 = vmatpush1.bf16.msra.mxu0 0
        %978 = vmatprep.subr.bf16.mxu0 0
        %979 = vmatpush1.bf16.msra.mxu0 0
        %980 = vmatprep.subr.bf16.mxu0 0
        %981 = vmatpush1.bf16.msra.mxu0 0
        %982 = vmatprep.subr.bf16.mxu0 0
        %983 = vmatpush1.bf16.msra.mxu0 0
        %984 = vmatprep.subr.bf16.mxu0 0
        %985 = vmatpush1.bf16.msra.mxu0 0
        %986 = vmatprep.subr.bf16.mxu0 0
        %987 = vmatpush1.bf16.msra.mxu0 0
        %988 = vmatprep.subr.bf16.mxu0 0
        %989 = vmatpush1.bf16.msra.mxu0 0
        %990 = vmatprep.subr.bf16.mxu0 0
        %991 = vmatpush1.bf16.msra.mxu0 0
        %992 = vmatprep.subr.bf16.mxu0 0
        %993 = vmatpush1.bf16.msra.mxu0 0
        %994 = vmatprep.mubr.bf16.mxu0 0
        %995 = vmatmul.mubr.bf16.gmra.mrb[0].mxu0 %v957
        %v996 = vpop.f32.mrb[0].mxu0
        %v997 = vadd.f32 0.0, %v996
        %v998 = vpop.f32.mrb[0].mxu0
        %v999 = vpop.f32.mrb[0].mxu0
        %v1000 = vpop.f32.mrb[0].mxu0
        %1001 = vdwg.mxu0
        %v1002 = vpack.c.bf16 %v997, %v997
        %v1004 = vunpack.c.l.b16 %v1002
        %v1005 = vpack.c.b16 %v1004, %v1004
        %1006 = vrot.lane.b32.xlu0 %v1005, 16
        %v1007 = vpop.permute.xlu0 %1006
        %vm1009 = vcmask 191616
        %1010 = vst.msk [vmem:[#allocation2] sm:$0xf] %vm1009, %v1007
        %1011 = vrot.lane.b32.xlu0 %v599, 104
        %v1012 = vpop.permute.xlu0 %1011
        %1013 = vrot.lane.b32.xlu0 %v539, 104
        %v1014 = vpop.permute.xlu0 %1013
        %v1016 = vsel %vm661, %v1012, 0
        %v1019 = vsel %vm661, %v1014, 0
        %1021 = vmatprep.subr.bf16.mxu0 0
        %1022 = vmatpush1.bf16.xpose.msra.mxu0 %v1019
        %1023 = vmatprep.subr.bf16.mxu0 0
        %1024 = vmatpush1.bf16.xpose.msra.mxu0 0
        %1025 = vmatprep.subr.bf16.mxu0 0
        %1026 = vmatpush1.bf16.xpose.msra.mxu0 0
        %1027 = vmatprep.subr.bf16.mxu0 0
        %1028 = vmatpush1.bf16.xpose.msra.mxu0 0
        %1029 = vmatprep.subr.bf16.mxu0 0
        %1030 = vmatpush1.bf16.xpose.msra.mxu0 0
        %1031 = vmatprep.subr.bf16.mxu0 0
        %1032 = vmatpush1.bf16.xpose.msra.mxu0 0
        %1033 = vmatprep.subr.bf16.mxu0 0
        %1034 = vmatpush1.bf16.xpose.msra.mxu0 0
        %1035 = vmatprep.subr.bf16.mxu0 0
        %1036 = vmatpush1.bf16.xpose.msra.mxu0 0
        %1037 = vmatprep.subr.bf16.mxu0 0
        %1038 = vmatpush1.bf16.xpose.msra.mxu0 0
        %1039 = vmatprep.subr.bf16.mxu0 0
        %1040 = vmatpush1.bf16.xpose.msra.mxu0 0
        %1041 = vmatprep.subr.bf16.mxu0 0
        %1042 = vmatpush1.bf16.xpose.msra.mxu0 0
        %1043 = vmatprep.subr.bf16.mxu0 0
        %1044 = vmatpush1.bf16.xpose.msra.mxu0 0
        %1045 = vmatprep.subr.bf16.mxu0 0
        %1046 = vmatpush1.bf16.xpose.msra.mxu0 0
        %1047 = vmatprep.subr.bf16.mxu0 0
        %1048 = vmatpush1.bf16.xpose.msra.mxu0 0
        %1049 = vmatprep.subr.bf16.mxu0 0
        %1050 = vmatpush1.bf16.xpose.msra.mxu0 0
        %1051 = vmatprep.subr.bf16.mxu0 0
        %1052 = vmatpush1.bf16.xpose.msra.mxu0 0
        %1053 = vmatprep.mubr.bf16.mxu0 0
        %1054 = vmatmul.mubr.bf16.gmra.mrb[0].mxu0 %v1016
        %v1055 = vpop.f32.mrb[0].mxu0
        %v1056 = vadd.f32 %v660, %v1055
        %v1057 = vpop.f32.mrb[0].mxu0
        %v1058 = vpop.f32.mrb[0].mxu0
        %v1059 = vpop.f32.mrb[0].mxu0
        %1060 = vdwg.mxu0
        %v1061 = vsel %vm661, %v1056, -inf
        %1062 = vmax.xlane.f32.xlu0 %v1061
        %v1063 = vpop.xlane.xlu0 %1062
        %v1064 = vsub.f32 %v1056, %v1063
        %v1065 = vmul.f32 %v1064, 1.442695
        %v1066 = vpow.pop %v1065
        %v1067 = vsel %vm661, %v1066, 0.0
        %1068 = vadd.xlane.f32.xlu0 %v1067
        %v1069 = vpop.xlane.xlu0 %1068
        %v1070 = vrcp.pop %v1069
        %v1071 = vmul.f32 %v1066, %v1070
        %v1072 = vpack.c.bf16 %v1071, %v1071
        %1073 = vrot.lane.b32.xlu0 %v659, 104
        %v1074 = vpop.permute.xlu0 %1073
        %v1076 = vsel %vm661, %v1072, 0
        %v1079 = vsel %vm723, %v1074, 0
        %1081 = vmatprep.subr.bf16.mxu0 0
        %1082 = vmatpush1.bf16.msra.mxu0 %v1079
        %1083 = vmatprep.subr.bf16.mxu0 0
        %1084 = vmatpush1.bf16.msra.mxu0 0
        %1085 = vmatprep.subr.bf16.mxu0 0
        %1086 = vmatpush1.bf16.msra.mxu0 0
        %1087 = vmatprep.subr.bf16.mxu0 0
        %1088 = vmatpush1.bf16.msra.mxu0 0
        %1089 = vmatprep.subr.bf16.mxu0 0
        %1090 = vmatpush1.bf16.msra.mxu0 0
        %1091 = vmatprep.subr.bf16.mxu0 0
        %1092 = vmatpush1.bf16.msra.mxu0 0
        %1093 = vmatprep.subr.bf16.mxu0 0
        %1094 = vmatpush1.bf16.msra.mxu0 0
        %1095 = vmatprep.subr.bf16.mxu0 0
        %1096 = vmatpush1.bf16.msra.mxu0 0
        %1097 = vmatprep.subr.bf16.mxu0 0
        %1098 = vmatpush1.bf16.msra.mxu0 0
        %1099 = vmatprep.subr.bf16.mxu0 0
        %1100 = vmatpush1.bf16.msra.mxu0 0
        %1101 = vmatprep.subr.bf16.mxu0 0
        %1102 = vmatpush1.bf16.msra.mxu0 0
        %1103 = vmatprep.subr.bf16.mxu0 0
        %1104 = vmatpush1.bf16.msra.mxu0 0
        %1105 = vmatprep.subr.bf16.mxu0 0
        %1106 = vmatpush1.bf16.msra.mxu0 0
        %1107 = vmatprep.subr.bf16.mxu0 0
        %1108 = vmatpush1.bf16.msra.mxu0 0
        %1109 = vmatprep.subr.bf16.mxu0 0
        %1110 = vmatpush1.bf16.msra.mxu0 0
        %1111 = vmatprep.subr.bf16.mxu0 0
        %1112 = vmatpush1.bf16.msra.mxu0 0
        %1113 = vmatprep.mubr.bf16.mxu0 0
        %1114 = vmatmul.mubr.bf16.gmra.mrb[0].mxu0 %v1076
        %v1115 = vpop.f32.mrb[0].mxu0
        %v1116 = vadd.f32 0.0, %v1115
        %v1117 = vpop.f32.mrb[0].mxu0
        %v1118 = vpop.f32.mrb[0].mxu0
        %v1119 = vpop.f32.mrb[0].mxu0
        %1120 = vdwg.mxu0
        %v1121 = vpack.c.bf16 %v1116, %v1116
        %v1123 = vunpack.c.l.b16 %v1121
        %v1124 = vpack.c.b16 %v1123, %v1123
        %1125 = vrot.lane.b32.xlu0 %v1124, 24
        %v1126 = vpop.permute.xlu0 %1125
        %vm1128 = vcmask 257216
        %1129 = vst.msk [vmem:[#allocation2] sm:$0xf] %vm1128, %v1126
        %v1130 = vld [vmem:[#allocation2] sm:$0xf]
        %v1131 = vld [vmem:[#allocation14] sm:$0xf]
        %v1132 = vld [vmem:[#allocation14 + $0x4] sm:$0xf]
        %v1133 = vld [vmem:[#allocation14 + $0x8] sm:$0xf]
        %v1134 = vld [vmem:[#allocation14 + $0xc] sm:$0xf]
        %v1135 = vld [vmem:[%s8] sm:$0x1]
        %v1137 = vlaneseq
        %v1138 = vshrl.u32 %v1137, 7
        %v1139 = vsub.s32 0, %v1138
        %v1140 = vrot.slane %v1135, %v1139
        %v1146 = vunpack.c.l.b16 %v1131
        %v1147 = vunpack.c.l.b16 %v1132
        %v1148 = vunpack.c.l.b16 %v1133
        %v1149 = vunpack.c.l.b16 %v1134
        %v1150 = vpack.c.b16 %v1147, %v1146
        %v1151 = vpack.c.b16 %v1149, %v1148
        %v1155 = vsel %vm495, %v1130, 0
        %1157 = vmatprep.subr.bf16.mxu0 0
        %1158 = vmatpush1.bf16.msra.mxu0 %v1150
        %1159 = vmatprep.subr.bf16.mxu0 0
        %1160 = vmatpush1.bf16.msra.mxu0 %v1151
        %1161 = vmatprep.subr.bf16.mxu0 0
        %1162 = vmatpush1.bf16.msra.mxu0 0
        %1163 = vmatprep.subr.bf16.mxu0 0
        %1164 = vmatpush1.bf16.msra.mxu0 0
        %1165 = vmatprep.subr.bf16.mxu0 0
        %1166 = vmatpush1.bf16.msra.mxu0 0
        %1167 = vmatprep.subr.bf16.mxu0 0
        %1168 = vmatpush1.bf16.msra.mxu0 0
        %1169 = vmatprep.subr.bf16.mxu0 0
        %1170 = vmatpush1.bf16.msra.mxu0 0
        %1171 = vmatprep.subr.bf16.mxu0 0
        %1172 = vmatpush1.bf16.msra.mxu0 0
        %1173 = vmatprep.subr.bf16.mxu0 0
        %1174 = vmatpush1.bf16.msra.mxu0 0
        %1175 = vmatprep.subr.bf16.mxu0 0
        %1176 = vmatpush1.bf16.msra.mxu0 0
        %1177 = vmatprep.subr.bf16.mxu0 0
        %1178 = vmatpush1.bf16.msra.mxu0 0
        %1179 = vmatprep.subr.bf16.mxu0 0
        %1180 = vmatpush1.bf16.msra.mxu0 0
        %1181 = vmatprep.subr.bf16.mxu0 0
        %1182 = vmatpush1.bf16.msra.mxu0 0
        %1183 = vmatprep.subr.bf16.mxu0 0
        %1184 = vmatpush1.bf16.msra.mxu0 0
        %1185 = vmatprep.subr.bf16.mxu0 0
        %1186 = vmatpush1.bf16.msra.mxu0 0
        %1187 = vmatprep.subr.bf16.mxu0 0
        %1188 = vmatpush1.bf16.msra.mxu0 0
        %1189 = vmatprep.mubr.bf16.mxu0 0
        %1190 = vmatmul.mubr.bf16.gmra.mrb[0].mxu0 %v1155
        %v1191 = vpop.f32.mrb[0].mxu0
        %v1192 = vadd.f32 %v1140, %v1191
        %v1193 = vpop.f32.mrb[0].mxu0
        %v1194 = vpop.f32.mrb[0].mxu0
        %v1195 = vpop.f32.mrb[0].mxu0
        %1196 = vdwg.mxu0
        %1197 = vst.msk [vmem:[%s474] sm:$0xff] %vm495, %v1192
        %s1198 = sand.u32 %s243, 1
        %s1199 = scalar_lea.sflag [#allocation5], %s1198
        %s1200 = sand.u32 %s243, 1
        %s1201 = smul.addr %s1200, 8
        %s1202 = scalar_lea.vmem [#allocation15], %s1201
        // Predicated region
        $region85: #{tpu_custom_call.1} parent=55 // pred_check
          %p1203 = pneg %p253
        $region86: #{tpu_custom_call.1} parent=55 // pred_check_branch
          %1205 = sbr.rel (%p1203) target = $region88
        $region87: #{tpu_custom_call.1} parent=55 // pred_region
          %s1207 = ssub.s32 128, 128
          %1208 = vsyncadd %s1199, %s1207
          %s1209 = smul.addr %s31, 128
          %s1210 = scalar_lea.hbm %s9, %s1209
          %s1212 = sshll.u32 %s1202, 4
          %s1213 = int_to_ptr.vmem [resolvable:$true] %s1212
          %1215 = dma.vmem_to_hbm [thread:$0]  %s1213, 128, %s1210, %s1199
        $region88: #{tpu_custom_call.1} parent=55 // pred_fallthru
          _
      $region56: #{tpu_custom_call.1} parent=5 // pred_fallthru
        _
      %p1216 = scmp.le.s32.totalorder 2, %s26
      // Predicated region
      $region89: #{tpu_custom_call.1} parent=5 // pred_check
        %p1217 = pneg %p1216
      $region90: #{tpu_custom_call.1} parent=5 // pred_check_branch
        %1219 = sbr.rel (%p1217) target = $region92
      $region91: #{tpu_custom_call.1} parent=5 // pred_region
        %s1220 = ssub.s32 %s26, 2
        // Predicated region
        $region93: #{tpu_custom_call.1} parent=91 // pred_check
          %p1221 = pneg %p259
        $region94: #{tpu_custom_call.1} parent=91 // pred_check_branch
          %1223 = sbr.rel (%p1221) target = $region96
        $region95: #{tpu_custom_call.1} parent=91 // pred_region
          %s1224 = sand.u32 %s244, 1
          %s1225 = scalar_lea.sflag [#allocation5], %s1224
          %s1226 = sand.u32 %s244, 1
          %s1227 = smul.addr %s1226, 8
          %s1228 = scalar_lea.vmem [#allocation15], %s1227
          %1229 = dma.done %s1225, 128
        $region96: #{tpu_custom_call.1} parent=91 // pred_fallthru
          _
      $region92: #{tpu_custom_call.1} parent=5 // pred_fallthru
        _
    $region6: #{tpu_custom_call.1} parent=1 // loop_footer
      %s30 = sadd.s32 1, %s26
    $region7: #{tpu_custom_call.1} parent=1 // loop_footer_branch
      %25 = sbr.rel target = $region3
    $region8: #{tpu_custom_call.1} parent=1 // loop_exit
      _
    %1230 = vsyncpa [#allocation4], 1
    %s1231 = scalar_lea.sflag [#allocation4], 1
    %1232 = vsyncpa %s1231, 1
    %1233 = vsyncpa [#allocation7], 1
    %s1234 = scalar_lea.sflag [#allocation7], 1
    %1235 = vsyncpa %s1234, 1
    %1236 = vsyncpa [#allocation10], 1
    %1237 = vsyncpa [#allocation13], 1
    %1238 = vsyncpa [#allocation5], 1
    %s1239 = scalar_lea.sflag [#allocation5], 1
    %1240 = vsyncpa %s1239, 1

</llo_original>
